<compile_context>
chip_gen: v5e
topology: v5e:2x2
jax: 0.10.0
libtpu: 0.0.40
codegen_flags: <defaults>
</compile_context>

<pallas_src>
import jax
import jax.numpy as jnp
from jax import lax
from jax.experimental import pallas as pl
from jax.experimental.pallas import tpu as pltpu


def gnn_conv_kernel(h_ref, he_ref, src_ref, dst_ref,
                    w1_ref, b1_ref, w2_ref, b2_ref,
                    w3_ref, b3_ref, w4_ref, b4_ref,
                    out_ref, acc_ref, iota_ref):
    f32 = jnp.float32
    bf16 = jnp.bfloat16
    step = pl.program_id(0)
    n_steps = pl.num_programs(0)
    n_nodes, _ = h_ref.shape
    tile_e, _ = he_ref.shape

    @pl.when(step == 0)
    def _init():
        acc_ref[...] = jnp.zeros_like(acc_ref)
        # Hoisted: node-id iota is filled once and reused read-only by every
        # subsequent grid step (the grid is a sequential loop on one TC).
        iota_ref[...] = lax.broadcasted_iota(jnp.int32, (n_nodes, tile_e), 0)

    # ---- Edge MLP: linear2(relu(linear1(he))) ----  (bf16 MXU, f32 accumulate)
    he = he_ref[...]                                                    # [TE, D] bf16
    he1 = jnp.maximum(
        jnp.dot(he, w1_ref[...], preferred_element_type=f32) + b1_ref[...], 0.0)
    he2 = jnp.dot(he1.astype(bf16), w2_ref[...],
                  preferred_element_type=f32) + b2_ref[...]             # [TE, D] f32

    # ---- One-hot tiles: direct bool->bf16 cast against the shared iota ----
    node_ids = iota_ref[...]                                            # [N, TE] i32
    src_oh_t = (node_ids == src_ref[...]).astype(bf16)                  # [N, TE]
    dst_oh_t = (node_ids == dst_ref[...]).astype(bf16)                  # [N, TE]

    # ---- Gather h[src] on the MXU: (src_oh_t)^T @ h (transposed-lhs contraction)
    h_src = lax.dot_general(src_oh_t, h_ref[...],
                            dimension_numbers=(((0,), (0,)), ((), ())),
                            preferred_element_type=f32)                 # [TE, D]

    # ---- Message + scatter-add into the resident accumulator ----
    # Note: messages are rounded to bf16 before the scatter matmul; the segment
    # sum itself accumulates in f32 (matches ref_forward_bf16 numerics).
    m = (h_src * he2).astype(bf16)                                      # [TE, D]
    acc_ref[...] += jnp.dot(dst_oh_t, m, preferred_element_type=f32)    # [N, D]

    # ---- Node MLP + store, only after the last edge tile ----
    @pl.when(step == n_steps - 1)
    def _finalize():
        h_agg = acc_ref[...]
        h3 = jnp.maximum(
            jnp.dot(h_agg.astype(bf16), w3_ref[...],
                    preferred_element_type=f32) + b3_ref[...], 0.0)
        out_ref[...] = (
            jnp.dot(h3.astype(bf16), w4_ref[...],
                    preferred_element_type=f32) + b4_ref[...]
        ).astype(out_ref.dtype)


def _vmem_limit_bytes():
    """~85% of this chip's VMEM, clamped to [48 MiB, 100 MiB]; safe fallback."""
    mib = 1024 * 1024
    try:
        cap = int(pltpu.get_tpu_info().vmem_capacity_bytes)
    except Exception:
        cap = 64 * mib          # conservative default: fits every generation
    return int(max(48 * mib, min(int(cap * 0.85), 100 * mib)))


def gnn_conv(h, he, src, dst, params, *, tile_e=1024):
    """h: [N, D] node feats, he: [E, D] edge feats, src/dst: [E] int32 indices.

    params: PyTorch nn.Linear layout -- w*: [D_out, D_in], b*: [D_out].
    """
    N, D = h.shape
    E = he.shape[0]
    bf16, f32 = jnp.bfloat16, jnp.float32

    # Edge tile must be a multiple of 128 (lane width) for the index BlockSpecs.
    tile_e = max(128, (int(tile_e) // 128) * 128)
    grid_e = pl.cdiv(E, tile_e)
    e_pad = grid_e * tile_e
    pad = e_pad - E

    # Padded edges get index -1 -> all-zero one-hot column -> contribute nothing.
    he_p = jnp.pad(he.astype(bf16), ((0, pad), (0, 0)))
    src_p = jnp.pad(src.astype(jnp.int32), (0, pad),
                    constant_values=-1).reshape(1, e_pad)
    dst_p = jnp.pad(dst.astype(jnp.int32), (0, pad),
                    constant_values=-1).reshape(1, e_pad)

    def wt(w):   # [out, in] -> [in, out], bf16 for the MXU
        return jnp.asarray(w, f32).T.astype(bf16)

    def bb(b):   # [D] -> [1, D], f32 (added post-accumulation)
        return jnp.asarray(b, f32).reshape(1, -1)

    args = (
        h.astype(bf16), he_p, src_p, dst_p,
        wt(params["w1"]), bb(params["b1"]),
        wt(params["w2"]), bb(params["b2"]),
        wt(params["w3"]), bb(params["b3"]),
        wt(params["w4"]), bb(params["b4"]),
    )

    def const(shape):
        return pl.BlockSpec(shape, lambda e: (0,) * len(shape))

    grid_spec = pltpu.PrefetchScalarGridSpec(
        num_scalar_prefetch=0,
        grid=(grid_e,),
        in_specs=[
            const((N, D)),                                  # h (VMEM-resident)
            pl.BlockSpec((tile_e, D), lambda e: (e, 0)),    # he tile (streamed)
            pl.BlockSpec((1, tile_e), lambda e: (0, e)),    # src tile (lane-dense)
            pl.BlockSpec((1, tile_e), lambda e: (0, e)),    # dst tile (lane-dense)
            const((D, D)), const((1, D)),                   # w1, b1
            const((D, D)), const((1, D)),                   # w2, b2
            const((D, D)), const((1, D)),                   # w3, b3
            const((D, D)), const((1, D)),                   # w4, b4
        ],
        out_specs=pl.BlockSpec((N, D), lambda e: (0, 0)),
        scratch_shapes=[
            pltpu.VMEM((N, D), jnp.float32),                # h_agg accumulator
            pltpu.VMEM((N, tile_e), jnp.int32),             # hoisted node-id iota
        ],
    )

    cost = pl.CostEstimate(
        flops=int(4 * e_pad * D * D          # edge MLP
                  + 4 * e_pad * N * D        # one-hot gather + scatter
                  + 4 * N * D * D),          # node MLP
        transcendentals=0,
        bytes_accessed=int(e_pad * D * 2 + 2 * e_pad * 4
                           + N * D * 2 + N * D * 4
                           + 4 * D * D * 2 + 4 * D * 4),
    )

    return pl.pallas_call(
        gnn_conv_kernel,
        out_shape=jax.ShapeDtypeStruct((N, D), jnp.float32),
        grid_spec=grid_spec,
        compiler_params=pltpu.CompilerParams(
            dimension_semantics=("arbitrary",),     # edge axis is a reduction
            vmem_limit_bytes=_vmem_limit_bytes(),
        ),
        cost_estimate=cost,
    )(*args)


def ref_forward(h, he, src, dst, params):
    """Pure-JAX f32 reference matching the PyTorch/DGL semantics."""
    he = jax.nn.relu(he @ params["w1"].T + params["b1"])
    he = he @ params["w2"].T + params["b2"]
    m = h[src] * he
    h_agg = jax.ops.segment_sum(m, dst, num_segments=h.shape[0])
    h = jax.nn.relu(h_agg @ params["w3"].T + params["b3"])
    return h @ params["w4"].T + params["b4"]


def ref_forward_bf16(h, he, src, dst, params):
    """Reference with the same bf16-operand / f32-accumulate numerics as the kernel."""
    bf16, f32 = jnp.bfloat16, jnp.float32

    def lin(x, w, b):
        return jnp.dot(x.astype(bf16), w.T.astype(bf16),
                       preferred_element_type=f32) + b

    he1 = jax.nn.relu(lin(he, params["w1"], params["b1"]))
    he2 = lin(he1, params["w2"], params["b2"])
    h_src = h.astype(bf16).astype(f32)[src]
    m = (h_src * he2).astype(bf16).astype(f32)
    h_agg = jax.ops.segment_sum(m, dst, num_segments=h.shape[0])
    h3 = jax.nn.relu(lin(h_agg, params["w3"], params["b3"]))
    return lin(h3, params["w4"], params["b4"])


if __name__ == "__main__":
    emb_dim = 128    # D (lane-dense: multiple of 128)
    num_nodes = 64   # N
    num_edges = 500  # E (not a multiple of the edge tile -> exercises padding path)

    key = jax.random.PRNGKey(0)
    keys = jax.random.split(key, 12)

    # PyTorch nn.Linear-style init: W [out, in], b [out]
    s = 1.0 / jnp.sqrt(emb_dim)
    params = {
        "w1": jax.random.uniform(keys[0], (emb_dim, emb_dim), jnp.float32, -s, s),
        "b1": jax.random.uniform(keys[1], (emb_dim,), jnp.float32, -s, s),
        "w2": jax.random.uniform(keys[2], (emb_dim, emb_dim), jnp.float32, -s, s),
        "b2": jax.random.uniform(keys[3], (emb_dim,), jnp.float32, -s, s),
        "w3": jax.random.uniform(keys[4], (emb_dim, emb_dim), jnp.float32, -s, s),
        "b3": jax.random.uniform(keys[5], (emb_dim,), jnp.float32, -s, s),
        "w4": jax.random.uniform(keys[6], (emb_dim, emb_dim), jnp.float32, -s, s),
        "b4": jax.random.uniform(keys[7], (emb_dim,), jnp.float32, -s, s),
    }

    # Node / edge features and a deterministic random graph (src -> dst per edge)
    h = jax.random.normal(keys[8], (num_nodes, emb_dim), jnp.float32)
    he = jax.random.normal(keys[9], (num_edges, emb_dim), jnp.float32)
    src = jax.random.randint(keys[10], (num_edges,), 0, num_nodes, dtype=jnp.int32)
    dst = jax.random.randint(keys[11], (num_edges,), 0, num_nodes, dtype=jnp.int32)

    ref_bf = ref_forward_bf16(h, he, src, dst, params)
    ref_fp = ref_forward(h, he, src, dst, params)

    # tile_e=128 -> 4 grid steps (exercises accumulate/finalize across steps);
    # default tile_e=1024 -> single padded tile (exercises the ragged-pad path).
    for te in (128, 1024):
        out = jax.block_until_ready(gnn_conv(h, he, src, dst, params, tile_e=te))
        assert out.shape == (num_nodes, emb_dim)
        err_bf = float(jnp.max(jnp.abs(out - ref_bf)))
        err_fp = float(jnp.max(jnp.abs(out - ref_fp)))
        assert jnp.allclose(out, ref_bf, atol=1e-2, rtol=1e-2), (
            "tile_e=%d mismatch vs bf16-matched reference: %g" % (te, err_bf))
        assert jnp.allclose(out, ref_fp, atol=5e-2, rtol=5e-2), (
            "tile_e=%d mismatch vs f32 reference: %g" % (te, err_fp))

    print("KERNEL_OK")
</pallas_src>

<mosaic_0001>
module attributes {stable_mosaic.version = 11 : i64} {
  func.func @gnn_conv_kernel(%arg0: i32, %arg1: memref<64x128xbf16, #tpu.memory_space<vmem>>, %arg2: memref<128x128xbf16, #tpu.memory_space<vmem>>, %arg3: memref<1x128xi32, #tpu.memory_space<vmem>>, %arg4: memref<1x128xi32, #tpu.memory_space<vmem>>, %arg5: memref<128x128xbf16, #tpu.memory_space<vmem>>, %arg6: memref<1x128xf32, #tpu.memory_space<vmem>>, %arg7: memref<128x128xbf16, #tpu.memory_space<vmem>>, %arg8: memref<1x128xf32, #tpu.memory_space<vmem>>, %arg9: memref<128x128xbf16, #tpu.memory_space<vmem>>, %arg10: memref<1x128xf32, #tpu.memory_space<vmem>>, %arg11: memref<128x128xbf16, #tpu.memory_space<vmem>>, %arg12: memref<1x128xf32, #tpu.memory_space<vmem>>, %arg13: memref<64x128xf32, #tpu.memory_space<vmem>>, %arg14: memref<64x128xf32, #tpu.memory_space<vmem>>, %arg15: memref<64x128xi32, #tpu.memory_space<vmem>>) attributes {dimension_semantics = [#tpu.dimension_semantics<arbitrary>], iteration_bounds = array<i64: 4>, scalar_prefetch = 0 : i64, scratch_operands = 2 : i64, tpu.core_type = #tpu.core_type<tc>, window_params = [{pipeline_mode = #tpu.pipeline_mode<synchronous>, transform_indices = @transform_0, window_bounds = array<i64: 64, 128>}, {transform_indices = @transform_1, window_bounds = array<i64: 128, 128>}, {transform_indices = @transform_2, window_bounds = array<i64: 1, 128>}, {transform_indices = @transform_3, window_bounds = array<i64: 1, 128>}, {pipeline_mode = #tpu.pipeline_mode<synchronous>, transform_indices = @transform_4, window_bounds = array<i64: 128, 128>}, {pipeline_mode = #tpu.pipeline_mode<synchronous>, transform_indices = @transform_5, window_bounds = array<i64: 1, 128>}, {pipeline_mode = #tpu.pipeline_mode<synchronous>, transform_indices = @transform_6, window_bounds = array<i64: 128, 128>}, {pipeline_mode = #tpu.pipeline_mode<synchronous>, transform_indices = @transform_7, window_bounds = array<i64: 1, 128>}, {pipeline_mode = #tpu.pipeline_mode<synchronous>, transform_indices = @transform_8, window_bounds = array<i64: 128, 128>}, {pipeline_mode = #tpu.pipeline_mode<synchronous>, transform_indices = @transform_9, window_bounds = array<i64: 1, 128>}, {pipeline_mode = #tpu.pipeline_mode<synchronous>, transform_indices = @transform_10, window_bounds = array<i64: 128, 128>}, {pipeline_mode = #tpu.pipeline_mode<synchronous>, transform_indices = @transform_11, window_bounds = array<i64: 1, 128>}, {pipeline_mode = #tpu.pipeline_mode<synchronous>, transform_indices = @transform_12, window_bounds = array<i64: 64, 128>}]} {
    %c0_i32 = arith.constant 0 : i32
    %0 = arith.cmpi eq, %arg0, %c0_i32 : i32
    %1 = arith.extui %0 : i1 to i32
    %c0_i32_0 = arith.constant 0 : i32
    %2 = arith.cmpi ne, %1, %c0_i32_0 : i32
    scf.if %2 {
      %cst_27 = arith.constant 0.000000e+00 : f32
      %41 = vector.broadcast %cst_27 : f32 to vector<64x128xf32>
      %c0_28 = arith.constant 0 : index
      %c0_29 = arith.constant 0 : index
      %42 = vector.load %arg14[%c0_28, %c0_29] : memref<64x128xf32, #tpu.memory_space<vmem>>, vector<64x128xf32>
      tpu.vector_store %arg14[%c0_28, %c0_29], %41 {strides = array<i32>} : memref<64x128xf32, #tpu.memory_space<vmem>>, vector<64x128xf32>,
      %43 = tpu.iota {dimensions = array<i32: 0>} : vector<64x128xi32>
      %c0_30 = arith.constant 0 : index
      %c0_31 = arith.constant 0 : index
      %44 = vector.load %arg15[%c0_30, %c0_31] : memref<64x128xi32, #tpu.memory_space<vmem>>, vector<64x128xi32>
      tpu.vector_store %arg15[%c0_30, %c0_31], %43 {strides = array<i32>} : memref<64x128xi32, #tpu.memory_space<vmem>>, vector<64x128xi32>,
    } else {
    }
    %c0 = arith.constant 0 : index
    %c0_1 = arith.constant 0 : index
    %3 = vector.load %arg2[%c0, %c0_1] : memref<128x128xbf16, #tpu.memory_space<vmem>>, vector<128x128xbf16>
    %c0_2 = arith.constant 0 : index
    %c0_3 = arith.constant 0 : index
    %4 = vector.load %arg5[%c0_2, %c0_3] : memref<128x128xbf16, #tpu.memory_space<vmem>>, vector<128x128xbf16>
    %cst = arith.constant dense<0.000000e+00> : vector<128x128xf32>
    %5 = tpu.matmul %3, %4, %cst {dimension_numbers = #tpu.dot_dimension_numbers<[1], [0], [0], [1], [0, 0, 1, 1], [], []>} : vector<128x128xbf16>, vector<128x128xbf16>, vector<128x128xf32> -> vector<128x128xf32>
    %c0_4 = arith.constant 0 : index
    %c0_5 = arith.constant 0 : index
    %6 = vector.load %arg6[%c0_4, %c0_5] : memref<1x128xf32, #tpu.memory_space<vmem>>, vector<1x128xf32>
    %7 = vector.broadcast %6 : vector<1x128xf32> to vector<128x128xf32>
    %8 = arith.addf %5, %7 : vector<128x128xf32>
    %cst_6 = arith.constant 0.000000e+00 : f32
    %9 = vector.broadcast %cst_6 : f32 to vector<128x128xf32>
    %10 = arith.maximumf %8, %9 : vector<128x128xf32>
    %11 = arith.truncf %10 : vector<128x128xf32> to vector<128x128xbf16>
    %c0_7 = arith.constant 0 : index
    %c0_8 = arith.constant 0 : index
    %12 = vector.load %arg7[%c0_7, %c0_8] : memref<128x128xbf16, #tpu.memory_space<vmem>>, vector<128x128xbf16>
    %cst_9 = arith.constant dense<0.000000e+00> : vector<128x128xf32>
    %13 = tpu.matmul %11, %12, %cst_9 {dimension_numbers = #tpu.dot_dimension_numbers<[1], [0], [0], [1], [0, 0, 1, 1], [], []>} : vector<128x128xbf16>, vector<128x128xbf16>, vector<128x128xf32> -> vector<128x128xf32>
    %c0_10 = arith.constant 0 : index
    %c0_11 = arith.constant 0 : index
    %14 = vector.load %arg8[%c0_10, %c0_11] : memref<1x128xf32, #tpu.memory_space<vmem>>, vector<1x128xf32>
    %15 = vector.broadcast %14 : vector<1x128xf32> to vector<128x128xf32>
    %16 = arith.addf %13, %15 : vector<128x128xf32>
    %c0_12 = arith.constant 0 : index
    %c0_13 = arith.constant 0 : index
    %17 = vector.load %arg15[%c0_12, %c0_13] : memref<64x128xi32, #tpu.memory_space<vmem>>, vector<64x128xi32>
    %c0_14 = arith.constant 0 : index
    %c0_15 = arith.constant 0 : index
    %18 = vector.load %arg3[%c0_14, %c0_15] : memref<1x128xi32, #tpu.memory_space<vmem>>, vector<1x128xi32>
    %19 = vector.broadcast %18 : vector<1x128xi32> to vector<64x128xi32>
    %20 = arith.cmpi eq, %17, %19 : vector<64x128xi32>
    %21 = arith.extui %20 : vector<64x128xi1> to vector<64x128xi32>
    %22 = arith.sitofp %21 : vector<64x128xi32> to vector<64x128xf32>
    %23 = arith.truncf %22 : vector<64x128xf32> to vector<64x128xbf16>
    %c0_16 = arith.constant 0 : index
    %c0_17 = arith.constant 0 : index
    %24 = vector.load %arg4[%c0_16, %c0_17] : memref<1x128xi32, #tpu.memory_space<vmem>>, vector<1x128xi32>
    %25 = vector.broadcast %24 : vector<1x128xi32> to vector<64x128xi32>
    %26 = arith.cmpi eq, %17, %25 : vector<64x128xi32>
    %27 = arith.extui %26 : vector<64x128xi1> to vector<64x128xi32>
    %28 = arith.sitofp %27 : vector<64x128xi32> to vector<64x128xf32>
    %29 = arith.truncf %28 : vector<64x128xf32> to vector<64x128xbf16>
    %c0_18 = arith.constant 0 : index
    %c0_19 = arith.constant 0 : index
    %30 = vector.load %arg1[%c0_18, %c0_19] : memref<64x128xbf16, #tpu.memory_space<vmem>>, vector<64x128xbf16>
    %cst_20 = arith.constant dense<0.000000e+00> : vector<128x128xf32>
    %31 = tpu.matmul %23, %30, %cst_20 {dimension_numbers = #tpu.dot_dimension_numbers<[0], [0], [1], [1], [0, 1, 1, 1], [], []>} : vector<64x128xbf16>, vector<64x128xbf16>, vector<128x128xf32> -> vector<128x128xf32>
    %32 = arith.mulf %31, %16 : vector<128x128xf32>
    %33 = arith.truncf %32 : vector<128x128xf32> to vector<128x128xbf16>
    %c0_21 = arith.constant 0 : index
    %c0_22 = arith.constant 0 : index
    %34 = vector.load %arg14[%c0_21, %c0_22] : memref<64x128xf32, #tpu.memory_space<vmem>>, vector<64x128xf32>
    %cst_23 = arith.constant dense<0.000000e+00> : vector<64x128xf32>
    %35 = tpu.matmul %29, %33, %cst_23 {dimension_numbers = #tpu.dot_dimension_numbers<[1], [0], [0], [1], [0, 0, 1, 1], [], []>} : vector<64x128xbf16>, vector<128x128xbf16>, vector<64x128xf32> -> vector<64x128xf32>
    %36 = arith.addf %34, %35 : vector<64x128xf32>
    %c0_24 = arith.constant 0 : index
    %c0_25 = arith.constant 0 : index
    %37 = vector.load %arg14[%c0_24, %c0_25] : memref<64x128xf32, #tpu.memory_space<vmem>>, vector<64x128xf32>
    tpu.vector_store %arg14[%c0_24, %c0_25], %36 {strides = array<i32>} : memref<64x128xf32, #tpu.memory_space<vmem>>, vector<64x128xf32>,
    %c3_i32 = arith.constant 3 : i32
    %38 = arith.cmpi eq, %arg0, %c3_i32 : i32
    %39 = arith.extui %38 : i1 to i32
    %c0_i32_26 = arith.constant 0 : i32
    %40 = arith.cmpi ne, %39, %c0_i32_26 : i32
    scf.if %40 {
      %c0_27 = arith.constant 0 : index
      %c0_28 = arith.constant 0 : index
      %41 = vector.load %arg14[%c0_27, %c0_28] : memref<64x128xf32, #tpu.memory_space<vmem>>, vector<64x128xf32>
      %42 = arith.truncf %41 : vector<64x128xf32> to vector<64x128xbf16>
      %c0_29 = arith.constant 0 : index
      %c0_30 = arith.constant 0 : index
      %43 = vector.load %arg9[%c0_29, %c0_30] : memref<128x128xbf16, #tpu.memory_space<vmem>>, vector<128x128xbf16>
      %cst_31 = arith.constant dense<0.000000e+00> : vector<64x128xf32>
      %44 = tpu.matmul %42, %43, %cst_31 {dimension_numbers = #tpu.dot_dimension_numbers<[1], [0], [0], [1], [0, 0, 1, 1], [], []>} : vector<64x128xbf16>, vector<128x128xbf16>, vector<64x128xf32> -> vector<64x128xf32>
      %c0_32 = arith.constant 0 : index
      %c0_33 = arith.constant 0 : index
      %45 = vector.load %arg10[%c0_32, %c0_33] : memref<1x128xf32, #tpu.memory_space<vmem>>, vector<1x128xf32>
      %46 = vector.broadcast %45 : vector<1x128xf32> to vector<64x128xf32>
      %47 = arith.addf %44, %46 : vector<64x128xf32>
      %cst_34 = arith.constant 0.000000e+00 : f32
      %48 = vector.broadcast %cst_34 : f32 to vector<64x128xf32>
      %49 = arith.maximumf %47, %48 : vector<64x128xf32>
      %50 = arith.truncf %49 : vector<64x128xf32> to vector<64x128xbf16>
      %c0_35 = arith.constant 0 : index
      %c0_36 = arith.constant 0 : index
      %51 = vector.load %arg11[%c0_35, %c0_36] : memref<128x128xbf16, #tpu.memory_space<vmem>>, vector<128x128xbf16>
      %cst_37 = arith.constant dense<0.000000e+00> : vector<64x128xf32>
      %52 = tpu.matmul %50, %51, %cst_37 {dimension_numbers = #tpu.dot_dimension_numbers<[1], [0], [0], [1], [0, 0, 1, 1], [], []>} : vector<64x128xbf16>, vector<128x128xbf16>, vector<64x128xf32> -> vector<64x128xf32>
      %c0_38 = arith.constant 0 : index
      %c0_39 = arith.constant 0 : index
      %53 = vector.load %arg12[%c0_38, %c0_39] : memref<1x128xf32, #tpu.memory_space<vmem>>, vector<1x128xf32>
      %54 = vector.broadcast %53 : vector<1x128xf32> to vector<64x128xf32>
      %55 = arith.addf %52, %54 : vector<64x128xf32>
      %c0_40 = arith.constant 0 : index
      %c0_41 = arith.constant 0 : index
      %56 = vector.load %arg13[%c0_40, %c0_41] : memref<64x128xf32, #tpu.memory_space<vmem>>, vector<64x128xf32>
      tpu.vector_store %arg13[%c0_40, %c0_41], %55 {strides = array<i32>} : memref<64x128xf32, #tpu.memory_space<vmem>>, vector<64x128xf32>,
    } else {
    }
    return
  }
  func.func @transform_0(%arg0: i32) -> (i32, i32) {
    %c0_i32 = arith.constant 0 : i32
    %c0_i32_0 = arith.constant 0 : i32
    %c0_i32_1 = arith.constant 0 : i32
    return %c0_i32, %c0_i32_0 : i32, i32
  }
  func.func @transform_1(%arg0: i32) -> (i32, i32) {
    %c0_i32 = arith.constant 0 : i32
    %c0_i32_0 = arith.constant 0 : i32
    return %arg0, %c0_i32 : i32, i32
  }
  func.func @transform_2(%arg0: i32) -> (i32, i32) {
    %c0_i32 = arith.constant 0 : i32
    %c0_i32_0 = arith.constant 0 : i32
    return %c0_i32, %arg0 : i32, i32
  }
  func.func @transform_3(%arg0: i32) -> (i32, i32) {
    %c0_i32 = arith.constant 0 : i32
    %c0_i32_0 = arith.constant 0 : i32
    return %c0_i32, %arg0 : i32, i32
  }
  func.func @transform_4(%arg0: i32) -> (i32, i32) {
    %c0_i32 = arith.constant 0 : i32
    %c0_i32_0 = arith.constant 0 : i32
    %c0_i32_1 = arith.constant 0 : i32
    return %c0_i32, %c0_i32_0 : i32, i32
  }
  func.func @transform_5(%arg0: i32) -> (i32, i32) {
    %c0_i32 = arith.constant 0 : i32
    %c0_i32_0 = arith.constant 0 : i32
    %c0_i32_1 = arith.constant 0 : i32
    return %c0_i32, %c0_i32_0 : i32, i32
  }
  func.func @transform_6(%arg0: i32) -> (i32, i32) {
    %c0_i32 = arith.constant 0 : i32
    %c0_i32_0 = arith.constant 0 : i32
    %c0_i32_1 = arith.constant 0 : i32
    return %c0_i32, %c0_i32_0 : i32, i32
  }
  func.func @transform_7(%arg0: i32) -> (i32, i32) {
    %c0_i32 = arith.constant 0 : i32
    %c0_i32_0 = arith.constant 0 : i32
    %c0_i32_1 = arith.constant 0 : i32
    return %c0_i32, %c0_i32_0 : i32, i32
  }
  func.func @transform_8(%arg0: i32) -> (i32, i32) {
    %c0_i32 = arith.constant 0 : i32
    %c0_i32_0 = arith.constant 0 : i32
    %c0_i32_1 = arith.constant 0 : i32
    return %c0_i32, %c0_i32_0 : i32, i32
  }
  func.func @transform_9(%arg0: i32) -> (i32, i32) {
    %c0_i32 = arith.constant 0 : i32
    %c0_i32_0 = arith.constant 0 : i32
    %c0_i32_1 = arith.constant 0 : i32
    return %c0_i32, %c0_i32_0 : i32, i32
  }
  func.func @transform_10(%arg0: i32) -> (i32, i32) {
    %c0_i32 = arith.constant 0 : i32
    %c0_i32_0 = arith.constant 0 : i32
    %c0_i32_1 = arith.constant 0 : i32
    return %c0_i32, %c0_i32_0 : i32, i32
  }
  func.func @transform_11(%arg0: i32) -> (i32, i32) {
    %c0_i32 = arith.constant 0 : i32
    %c0_i32_0 = arith.constant 0 : i32
    %c0_i32_1 = arith.constant 0 : i32
    return %c0_i32, %c0_i32_0 : i32, i32
  }
  func.func @transform_12(%arg0: i32) -> (i32, i32) {
    %c0_i32 = arith.constant 0 : i32
    %c0_i32_0 = arith.constant 0 : i32
    %c0_i32_1 = arith.constant 0 : i32
    return %c0_i32, %c0_i32_0 : i32, i32
  }
}

</mosaic_0001>

<llo_original>
// kernel: tpu_custom_call.1
$region0: #{tpu_custom_call.1}
  #allocation0 [shape = 'u32[]', space=smem, size = 0x4, offset = 0x4, fixed_abs, tag = 'smem constant byte address 0x4 - core index']
  #allocation1 [shape = 'u32[72,128]{1,0:T(1,128)}', space=vmem, size = 0x9000, scoped, tag = 'internal scratch']
  #allocation2 [shape = 'f32[64,128]{1,0:T(8,128)}', space=vmem, size = 0x8000, scoped, tag = 'scratch operand']
  #allocation3 [shape = 's32[64,128]{1,0:T(8,128)}', space=vmem, size = 0x8000, scoped, tag = 'scratch operand']
  %s0 = inlined_call_operand.hbm [shape: bf16[64,128], index: 0, kind: input, shape index: {}]
  %s1 = inlined_call_operand.hbm [shape: bf16[512,128], index: 1, kind: input, shape index: {}]
  %s2 = inlined_call_operand.hbm [shape: s32[1,512], index: 2, kind: input, shape index: {}]
  %s3 = inlined_call_operand.hbm [shape: s32[1,512], index: 3, kind: input, shape index: {}]
  %s4 = inlined_call_operand.hbm [shape: bf16[128,128], index: 4, kind: input, shape index: {}]
  %s5 = inlined_call_operand.vmem [shape: f32[1,128], index: 5, kind: input, shape index: {}]
  %s6 = inlined_call_operand.hbm [shape: bf16[128,128], index: 6, kind: input, shape index: {}]
  %s7 = inlined_call_operand.vmem [shape: f32[1,128], index: 7, kind: input, shape index: {}]
  %s8 = inlined_call_operand.hbm [shape: bf16[128,128], index: 8, kind: input, shape index: {}]
  %s9 = inlined_call_operand.vmem [shape: f32[1,128], index: 9, kind: input, shape index: {}]
  %s10 = inlined_call_operand.hbm [shape: bf16[128,128], index: 10, kind: input, shape index: {}]
  %s11 = inlined_call_operand.vmem [shape: f32[1,128], index: 11, kind: input, shape index: {}]
  %s12 = inlined_call_operand.hbm [shape: f32[64,128], index: 12, kind: output, shape index: {}]
  %s13 = sld [smem:[#allocation0]]
  $region121: #{tpu_custom_call.1} parent=0
    _
  %s15 = ssub.s32 1, %s13
  %s16 = scalar_select 0, %s15, %s13
  $region1: #{tpu_custom_call.1} parent=0
    #allocation4 [shape = 'u8[16384]{0}', space=vmem, size = 0x4000, scoped, tag = 'input window, operand 0, single buffered']
    #allocation5 [shape = 's32[2]{0}', space=sflag, size = 0x8, scoped, tag = 'scoped memory for tpu_custom_call.1']
    #allocation6 [shape = 's32[2]{0}', space=sflag, size = 0x8, scoped, tag = 'scoped memory for tpu_custom_call.1']
    #allocation7 [shape = 'u8[65536]{0}', space=vmem, size = 0x10000, scoped, tag = 'input window, operand 1']
    #allocation8 [shape = 's32[2]{0}', space=sflag, size = 0x8, scoped, tag = 'scoped memory for tpu_custom_call.1']
    #allocation9 [shape = 'u8[1024]{0}', space=vmem, size = 0x400, scoped, tag = 'input window, operand 2']
    #allocation10 [shape = 'u8[1024]{0}', space=vmem, size = 0x400, scoped, tag = 'input window, operand 3']
    #allocation11 [shape = 's32[2]{0}', space=sflag, size = 0x8, scoped, tag = 'scoped memory for tpu_custom_call.1']
    #allocation12 [shape = 'u8[32768]{0}', space=vmem, size = 0x8000, scoped, tag = 'input window, operand 4, single buffered']
    #allocation13 [shape = 'u8[32768]{0}', space=vmem, size = 0x8000, scoped, tag = 'input window, operand 6, single buffered']
    #allocation14 [shape = 's32[1]{0}', space=sflag, size = 0x4, scoped, tag = 'scoped memory for tpu_custom_call.1']
    #allocation15 [shape = 'u8[32768]{0}', space=vmem, size = 0x8000, scoped, tag = 'input window, operand 8, single buffered']
    #allocation16 [shape = 'u8[32768]{0}', space=vmem, size = 0x8000, scoped, tag = 'input window, operand 10, single buffered']
    #allocation17 [shape = 's32[1]{0}', space=sflag, size = 0x4, scoped, tag = 'scoped memory for tpu_custom_call.1']
    #allocation18 [shape = 'u8[32768]{0}', space=vmem, size = 0x8000, scoped, tag = 'output window, operand 0, single buffered']
    %17 = vsyncpa [#allocation5], 0
    %18 = vsyncpa [#allocation8], 0
    %s19 = scalar_lea.sflag [#allocation8], 1
    %20 = vsyncpa %s19, 0
    %21 = vsyncpa [#allocation11], 0
    %s22 = scalar_lea.sflag [#allocation11], 1
    %23 = vsyncpa %s22, 0
    %24 = vsyncpa [#allocation14], 0
    %25 = vsyncpa [#allocation17], 0
    %26 = vsyncpa [#allocation6], 0
    loop: start=0, step=1, limit=6
    $region2: #{tpu_custom_call.1} parent=1 // loop_pre_header
      _
    $region3: #{tpu_custom_call.1} parent=1 // loop_header
      %s28 = sphi 0, %s32
      %p29 = scmp.ge.s32.totalorder %s28, 6
      %s36 = sphi 0, %s36
      %s38 = sphi 0, %s36
      %s39 = sphi 0, %s38
      %s53 = sphi 0, %s39
      %s59 = sphi 0, %s61
      %s62 = sphi 0, %s59
      %s63 = sphi 0, %s62
      %s79 = sphi 0, %s63
      %s85 = sphi 0, %s87
      %s88 = sphi 0, %s85
      %s89 = sphi 0, %s88
      %s105 = sphi 0, %s89
      %s111 = sphi 0, %s113
      %s114 = sphi 0, %s111
      %s115 = sphi 0, %s114
      %s131 = sphi 0, %s115
      %s135 = sphi 0, %s135
      %s137 = sphi 0, %s135
      %s138 = sphi 0, %s137
      %s152 = sphi 0, %s138
      %s156 = sphi 0, %s156
      %s158 = sphi 0, %s156
      %s159 = sphi 0, %s158
      %s173 = sphi 0, %s159
      %s177 = sphi 0, %s177
      %s179 = sphi 0, %s177
      %s180 = sphi 0, %s179
      %s194 = sphi 0, %s180
      %s198 = sphi 0, %s198
      %s200 = sphi 0, %s198
      %s201 = sphi 0, %s200
      %s215 = sphi 0, %s201
      %s219 = sphi 0, %s219
      %s221 = sphi 0, %s219
      %s222 = sphi 0, %s221
      %s236 = sphi 0, %s222
      %s240 = sphi 0, %s240
      %s242 = sphi 0, %s240
      %s243 = sphi 0, %s242
      %s257 = sphi 0, %s243
      %s261 = sphi 0, %s261
      %s263 = sphi 0, %s261
      %s264 = sphi 0, %s263
      %s278 = sphi 0, %s264
      %s282 = sphi 0, %s282
      %s284 = sphi 0, %s282
      %s285 = sphi 0, %s284
      %s299 = sphi 0, %s285
      %s303 = sphi 0, %s303
      %s305 = sphi 0, %s303
      %s306 = sphi 0, %s305
      %s320 = sphi 0, %s306
    $region4: #{tpu_custom_call.1} parent=1 // loop_header_branch
      %31 = sbr.rel (%p29) target = $region8
    $region5: #{tpu_custom_call.1} parent=1 // loop_body
      %s33 = ssub.s32 %s28, 1
      %s34 = ssub.s32 %s28, 2
      %s35 = sadd.s32 %s28, 1
      %s37 = sadd.s32 %s36, 1
      %p40 = scmp.eq.s32.totalorder %s28, 3
      %p41 = scmp.ne.s32.totalorder %s36, %s38
      %p42 = scmp.eq.s32.totalorder %s28, 0
      %p43 = por %p41, %p42
      %p44 = scmp.ne.s32.totalorder %s36, %s38
      %p45 = scmp.eq.s32.totalorder %s33, 3
      %p46 = por %p44, %p45
      %p47 = scmp.ne.s32.totalorder %s38, %s39
      %p48 = scmp.eq.s32.totalorder %s33, 0
      %p49 = por %p47, %p48
      %p50 = scmp.ne.s32.totalorder %s38, %s39
      %p51 = scmp.eq.s32.totalorder %s34, 3
      %p52 = por %p50, %p51
      %p54 = scmp.ne.s32.totalorder %s39, %s53
      %p55 = scmp.eq.s32.totalorder %s34, 0
      %p56 = por %p54, %p55
      %s57 = ssub.s32 %s28, %s35
      %p58 = scmp.eq.s32.totalorder %s57, 0
      %s60 = sadd.s32 %s59, 1
      %s61 = scalar_select %p58, %s59, %s60
      %p64 = pneg %p58
      %p65 = scmp.eq.s32.totalorder %s28, 3
      %p66 = por %p64, %p65
      %p67 = scmp.ne.s32.totalorder %s59, %s62
      %p68 = scmp.eq.s32.totalorder %s28, 0
      %p69 = por %p67, %p68
      %p70 = scmp.ne.s32.totalorder %s59, %s62
      %p71 = scmp.eq.s32.totalorder %s33, 3
      %p72 = por %p70, %p71
      %p73 = scmp.ne.s32.totalorder %s62, %s63
      %p74 = scmp.eq.s32.totalorder %s33, 0
      %p75 = por %p73, %p74
      %p76 = scmp.ne.s32.totalorder %s62, %s63
      %p77 = scmp.eq.s32.totalorder %s34, 3
      %p78 = por %p76, %p77
      %p80 = scmp.ne.s32.totalorder %s63, %s79
      %p81 = scmp.eq.s32.totalorder %s34, 0
      %p82 = por %p80, %p81
      %s83 = ssub.s32 %s28, %s35
      %p84 = scmp.eq.s32.totalorder %s83, 0
      %s86 = sadd.s32 %s85, 1
      %s87 = scalar_select %p84, %s85, %s86
      %p90 = pneg %p84
      %p91 = scmp.eq.s32.totalorder %s28, 3
      %p92 = por %p90, %p91
      %p93 = scmp.ne.s32.totalorder %s85, %s88
      %p94 = scmp.eq.s32.totalorder %s28, 0
      %p95 = por %p93, %p94
      %p96 = scmp.ne.s32.totalorder %s85, %s88
      %p97 = scmp.eq.s32.totalorder %s33, 3
      %p98 = por %p96, %p97
      %p99 = scmp.ne.s32.totalorder %s88, %s89
      %p100 = scmp.eq.s32.totalorder %s33, 0
      %p101 = por %p99, %p100
      %p102 = scmp.ne.s32.totalorder %s88, %s89
      %p103 = scmp.eq.s32.totalorder %s34, 3
      %p104 = por %p102, %p103
      %p106 = scmp.ne.s32.totalorder %s89, %s105
      %p107 = scmp.eq.s32.totalorder %s34, 0
      %p108 = por %p106, %p107
      %s109 = ssub.s32 %s28, %s35
      %p110 = scmp.eq.s32.totalorder %s109, 0
      %s112 = sadd.s32 %s111, 1
      %s113 = scalar_select %p110, %s111, %s112
      %p116 = pneg %p110
      %p117 = scmp.eq.s32.totalorder %s28, 3
      %p118 = por %p116, %p117
      %p119 = scmp.ne.s32.totalorder %s111, %s114
      %p120 = scmp.eq.s32.totalorder %s28, 0
      %p121 = por %p119, %p120
      %p122 = scmp.ne.s32.totalorder %s111, %s114
      %p123 = scmp.eq.s32.totalorder %s33, 3
      %p124 = por %p122, %p123
      %p125 = scmp.ne.s32.totalorder %s114, %s115
      %p126 = scmp.eq.s32.totalorder %s33, 0
      %p127 = por %p125, %p126
      %p128 = scmp.ne.s32.totalorder %s114, %s115
      %p129 = scmp.eq.s32.totalorder %s34, 3
      %p130 = por %p128, %p129
      %p132 = scmp.ne.s32.totalorder %s115, %s131
      %p133 = scmp.eq.s32.totalorder %s34, 0
      %p134 = por %p132, %p133
      %s136 = sadd.s32 %s135, 1
      %p139 = scmp.eq.s32.totalorder %s28, 3
      %p140 = scmp.ne.s32.totalorder %s135, %s137
      %p141 = scmp.eq.s32.totalorder %s28, 0
      %p142 = por %p140, %p141
      %p143 = scmp.ne.s32.totalorder %s135, %s137
      %p144 = scmp.eq.s32.totalorder %s33, 3
      %p145 = por %p143, %p144
      %p146 = scmp.ne.s32.totalorder %s137, %s138
      %p147 = scmp.eq.s32.totalorder %s33, 0
      %p148 = por %p146, %p147
      %p149 = scmp.ne.s32.totalorder %s137, %s138
      %p150 = scmp.eq.s32.totalorder %s34, 3
      %p151 = por %p149, %p150
      %p153 = scmp.ne.s32.totalorder %s138, %s152
      %p154 = scmp.eq.s32.totalorder %s34, 0
      %p155 = por %p153, %p154
      %s157 = sadd.s32 %s156, 1
      %p160 = scmp.eq.s32.totalorder %s28, 3
      %p161 = scmp.ne.s32.totalorder %s156, %s158
      %p162 = scmp.eq.s32.totalorder %s28, 0
      %p163 = por %p161, %p162
      %p164 = scmp.ne.s32.totalorder %s156, %s158
      %p165 = scmp.eq.s32.totalorder %s33, 3
      %p166 = por %p164, %p165
      %p167 = scmp.ne.s32.totalorder %s158, %s159
      %p168 = scmp.eq.s32.totalorder %s33, 0
      %p169 = por %p167, %p168
      %p170 = scmp.ne.s32.totalorder %s158, %s159
      %p171 = scmp.eq.s32.totalorder %s34, 3
      %p172 = por %p170, %p171
      %p174 = scmp.ne.s32.totalorder %s159, %s173
      %p175 = scmp.eq.s32.totalorder %s34, 0
      %p176 = por %p174, %p175
      %s178 = sadd.s32 %s177, 1
      %p181 = scmp.eq.s32.totalorder %s28, 3
      %p182 = scmp.ne.s32.totalorder %s177, %s179
      %p183 = scmp.eq.s32.totalorder %s28, 0
      %p184 = por %p182, %p183
      %p185 = scmp.ne.s32.totalorder %s177, %s179
      %p186 = scmp.eq.s32.totalorder %s33, 3
      %p187 = por %p185, %p186
      %p188 = scmp.ne.s32.totalorder %s179, %s180
      %p189 = scmp.eq.s32.totalorder %s33, 0
      %p190 = por %p188, %p189
      %p191 = scmp.ne.s32.totalorder %s179, %s180
      %p192 = scmp.eq.s32.totalorder %s34, 3
      %p193 = por %p191, %p192
      %p195 = scmp.ne.s32.totalorder %s180, %s194
      %p196 = scmp.eq.s32.totalorder %s34, 0
      %p197 = por %p195, %p196
      %s199 = sadd.s32 %s198, 1
      %p202 = scmp.eq.s32.totalorder %s28, 3
      %p203 = scmp.ne.s32.totalorder %s198, %s200
      %p204 = scmp.eq.s32.totalorder %s28, 0
      %p205 = por %p203, %p204
      %p206 = scmp.ne.s32.totalorder %s198, %s200
      %p207 = scmp.eq.s32.totalorder %s33, 3
      %p208 = por %p206, %p207
      %p209 = scmp.ne.s32.totalorder %s200, %s201
      %p210 = scmp.eq.s32.totalorder %s33, 0
      %p211 = por %p209, %p210
      %p212 = scmp.ne.s32.totalorder %s200, %s201
      %p213 = scmp.eq.s32.totalorder %s34, 3
      %p214 = por %p212, %p213
      %p216 = scmp.ne.s32.totalorder %s201, %s215
      %p217 = scmp.eq.s32.totalorder %s34, 0
      %p218 = por %p216, %p217
      %s220 = sadd.s32 %s219, 1
      %p223 = scmp.eq.s32.totalorder %s28, 3
      %p224 = scmp.ne.s32.totalorder %s219, %s221
      %p225 = scmp.eq.s32.totalorder %s28, 0
      %p226 = por %p224, %p225
      %p227 = scmp.ne.s32.totalorder %s219, %s221
      %p228 = scmp.eq.s32.totalorder %s33, 3
      %p229 = por %p227, %p228
      %p230 = scmp.ne.s32.totalorder %s221, %s222
      %p231 = scmp.eq.s32.totalorder %s33, 0
      %p232 = por %p230, %p231
      %p233 = scmp.ne.s32.totalorder %s221, %s222
      %p234 = scmp.eq.s32.totalorder %s34, 3
      %p235 = por %p233, %p234
      %p237 = scmp.ne.s32.totalorder %s222, %s236
      %p238 = scmp.eq.s32.totalorder %s34, 0
      %p239 = por %p237, %p238
      %s241 = sadd.s32 %s240, 1
      %p244 = scmp.eq.s32.totalorder %s28, 3
      %p245 = scmp.ne.s32.totalorder %s240, %s242
      %p246 = scmp.eq.s32.totalorder %s28, 0
      %p247 = por %p245, %p246
      %p248 = scmp.ne.s32.totalorder %s240, %s242
      %p249 = scmp.eq.s32.totalorder %s33, 3
      %p250 = por %p248, %p249
      %p251 = scmp.ne.s32.totalorder %s242, %s243
      %p252 = scmp.eq.s32.totalorder %s33, 0
      %p253 = por %p251, %p252
      %p254 = scmp.ne.s32.totalorder %s242, %s243
      %p255 = scmp.eq.s32.totalorder %s34, 3
      %p256 = por %p254, %p255
      %p258 = scmp.ne.s32.totalorder %s243, %s257
      %p259 = scmp.eq.s32.totalorder %s34, 0
      %p260 = por %p258, %p259
      %s262 = sadd.s32 %s261, 1
      %p265 = scmp.eq.s32.totalorder %s28, 3
      %p266 = scmp.ne.s32.totalorder %s261, %s263
      %p267 = scmp.eq.s32.totalorder %s28, 0
      %p268 = por %p266, %p267
      %p269 = scmp.ne.s32.totalorder %s261, %s263
      %p270 = scmp.eq.s32.totalorder %s33, 3
      %p271 = por %p269, %p270
      %p272 = scmp.ne.s32.totalorder %s263, %s264
      %p273 = scmp.eq.s32.totalorder %s33, 0
      %p274 = por %p272, %p273
      %p275 = scmp.ne.s32.totalorder %s263, %s264
      %p276 = scmp.eq.s32.totalorder %s34, 3
      %p277 = por %p275, %p276
      %p279 = scmp.ne.s32.totalorder %s264, %s278
      %p280 = scmp.eq.s32.totalorder %s34, 0
      %p281 = por %p279, %p280
      %s283 = sadd.s32 %s282, 1
      %p286 = scmp.eq.s32.totalorder %s28, 3
      %p287 = scmp.ne.s32.totalorder %s282, %s284
      %p288 = scmp.eq.s32.totalorder %s28, 0
      %p289 = por %p287, %p288
      %p290 = scmp.ne.s32.totalorder %s282, %s284
      %p291 = scmp.eq.s32.totalorder %s33, 3
      %p292 = por %p290, %p291
      %p293 = scmp.ne.s32.totalorder %s284, %s285
      %p294 = scmp.eq.s32.totalorder %s33, 0
      %p295 = por %p293, %p294
      %p296 = scmp.ne.s32.totalorder %s284, %s285
      %p297 = scmp.eq.s32.totalorder %s34, 3
      %p298 = por %p296, %p297
      %p300 = scmp.ne.s32.totalorder %s285, %s299
      %p301 = scmp.eq.s32.totalorder %s34, 0
      %p302 = por %p300, %p301
      %s304 = sadd.s32 %s303, 1
      %p307 = scmp.eq.s32.totalorder %s28, 3
      %p308 = scmp.ne.s32.totalorder %s303, %s305
      %p309 = scmp.eq.s32.totalorder %s28, 0
      %p310 = por %p308, %p309
      %p311 = scmp.ne.s32.totalorder %s303, %s305
      %p312 = scmp.eq.s32.totalorder %s33, 3
      %p313 = por %p311, %p312
      %p314 = scmp.ne.s32.totalorder %s305, %s306
      %p315 = scmp.eq.s32.totalorder %s33, 0
      %p316 = por %p314, %p315
      %p317 = scmp.ne.s32.totalorder %s305, %s306
      %p318 = scmp.eq.s32.totalorder %s34, 3
      %p319 = por %p317, %p318
      %p321 = scmp.ne.s32.totalorder %s306, %s320
      %p322 = scmp.eq.s32.totalorder %s34, 0
      %p323 = por %p321, %p322
      %p324 = scmp.le.s32.totalorder 1, %s28
      %p325 = scmp.lt.s32.totalorder %s28, 5
      %p326 = pnand %p324, %p325
      %p327 = pneg %p326
      // Predicated region
      $region9: #{tpu_custom_call.1} parent=5 // pred_check
        _
      $region10: #{tpu_custom_call.1} parent=5 // pred_check_branch
        %329 = sbr.rel (%p326) target = $region12
      $region11: #{tpu_custom_call.1} parent=5 // pred_region
        %s330 = ssub.s32 %s28, 1
        // Predicated region
        $region13: #{tpu_custom_call.1} parent=11 // pred_check
          %p331 = pneg %p49
        $region14: #{tpu_custom_call.1} parent=11 // pred_check_branch
          %333 = sbr.rel (%p331) target = $region16
        $region15: #{tpu_custom_call.1} parent=11 // pred_region
          %335 = vsyncadd [#allocation5], 0
          %s336 = sshll.u32 %s0, 4
          %s337 = int_to_ptr.hbm [resolvable:$true] %s336
          %s338 = sshll.u32 [#allocation4], 4
          %s339 = int_to_ptr.vmem [resolvable:$true] %s338
          %344 = dma.hbm_to_vmem [thread:$0]  %s337, 512, %s339, [#allocation5], 64, 64, 4
        $region16: #{tpu_custom_call.1} parent=11 // pred_fallthru
          _
        // Predicated region
        $region17: #{tpu_custom_call.1} parent=11 // pred_check
          %p345 = pneg %p148
        $region18: #{tpu_custom_call.1} parent=11 // pred_check_branch
          %347 = sbr.rel (%p345) target = $region20
        $region19: #{tpu_custom_call.1} parent=11 // pred_region
          %349 = vsyncadd [#allocation11], 0
          %s350 = sshll.u32 %s4, 4
          %s351 = int_to_ptr.hbm [resolvable:$true] %s350
          %s352 = sshll.u32 [#allocation12], 4
          %s353 = int_to_ptr.vmem [resolvable:$true] %s352
          %358 = dma.hbm_to_vmem [thread:$0]  %s351, 1024, %s353, [#allocation11], 64, 64, 4
        $region20: #{tpu_custom_call.1} parent=11 // pred_fallthru
          _
        // Predicated region
        $region21: #{tpu_custom_call.1} parent=11 // pred_check
          %p359 = pneg %p169
        $region22: #{tpu_custom_call.1} parent=11 // pred_check_branch
          %361 = sbr.rel (%p359) target = $region24
        $region23: #{tpu_custom_call.1} parent=11 // pred_region
          _
        $region24: #{tpu_custom_call.1} parent=11 // pred_fallthru
          _
        // Predicated region
        $region25: #{tpu_custom_call.1} parent=11 // pred_check
          %p362 = pneg %p190
        $region26: #{tpu_custom_call.1} parent=11 // pred_check_branch
          %364 = sbr.rel (%p362) target = $region28
        $region27: #{tpu_custom_call.1} parent=11 // pred_region
          %366 = vsyncadd [#allocation14], 0
          %s367 = sshll.u32 %s6, 4
          %s368 = int_to_ptr.hbm [resolvable:$true] %s367
          %s369 = sshll.u32 [#allocation13], 4
          %s370 = int_to_ptr.vmem [resolvable:$true] %s369
          %375 = dma.hbm_to_vmem [thread:$0]  %s368, 1024, %s370, [#allocation14], 64, 64, 4
        $region28: #{tpu_custom_call.1} parent=11 // pred_fallthru
          _
        // Predicated region
        $region29: #{tpu_custom_call.1} parent=11 // pred_check
          %p376 = pneg %p211
        $region30: #{tpu_custom_call.1} parent=11 // pred_check_branch
          %378 = sbr.rel (%p376) target = $region32
        $region31: #{tpu_custom_call.1} parent=11 // pred_region
          _
        $region32: #{tpu_custom_call.1} parent=11 // pred_fallthru
          _
        // Predicated region
        $region33: #{tpu_custom_call.1} parent=11 // pred_check
          %p379 = pneg %p232
        $region34: #{tpu_custom_call.1} parent=11 // pred_check_branch
          %381 = sbr.rel (%p379) target = $region36
        $region35: #{tpu_custom_call.1} parent=11 // pred_region
          %383 = vsyncadd [#allocation14], 0
          %s384 = sshll.u32 %s8, 4
          %s385 = int_to_ptr.hbm [resolvable:$true] %s384
          %s386 = sshll.u32 [#allocation15], 4
          %s387 = int_to_ptr.vmem [resolvable:$true] %s386
          %392 = dma.hbm_to_vmem [thread:$0]  %s385, 1024, %s387, [#allocation14], 64, 64, 4
        $region36: #{tpu_custom_call.1} parent=11 // pred_fallthru
          _
        // Predicated region
        $region37: #{tpu_custom_call.1} parent=11 // pred_check
          %p393 = pneg %p253
        $region38: #{tpu_custom_call.1} parent=11 // pred_check_branch
          %395 = sbr.rel (%p393) target = $region40
        $region39: #{tpu_custom_call.1} parent=11 // pred_region
          _
        $region40: #{tpu_custom_call.1} parent=11 // pred_fallthru
          _
        // Predicated region
        $region41: #{tpu_custom_call.1} parent=11 // pred_check
          %p396 = pneg %p274
        $region42: #{tpu_custom_call.1} parent=11 // pred_check_branch
          %398 = sbr.rel (%p396) target = $region44
        $region43: #{tpu_custom_call.1} parent=11 // pred_region
          %400 = vsyncadd [#allocation17], 0
          %s401 = sshll.u32 %s10, 4
          %s402 = int_to_ptr.hbm [resolvable:$true] %s401
          %s403 = sshll.u32 [#allocation16], 4
          %s404 = int_to_ptr.vmem [resolvable:$true] %s403
          %409 = dma.hbm_to_vmem [thread:$0]  %s402, 1024, %s404, [#allocation17], 64, 64, 4
        $region44: #{tpu_custom_call.1} parent=11 // pred_fallthru
          _
        // Predicated region
        $region45: #{tpu_custom_call.1} parent=11 // pred_check
          %p410 = pneg %p295
        $region46: #{tpu_custom_call.1} parent=11 // pred_check_branch
          %412 = sbr.rel (%p410) target = $region48
        $region47: #{tpu_custom_call.1} parent=11 // pred_region
          _
        $region48: #{tpu_custom_call.1} parent=11 // pred_fallthru
          _
      $region12: #{tpu_custom_call.1} parent=5 // pred_fallthru
        _
      %p413 = scmp.lt.s32.totalorder %s28, 4
      // Predicated region
      $region49: #{tpu_custom_call.1} parent=5 // pred_check
        %p414 = pneg %p413
      $region50: #{tpu_custom_call.1} parent=5 // pred_check_branch
        %416 = sbr.rel (%p414) target = $region52
      $region51: #{tpu_custom_call.1} parent=5 // pred_region
        // Predicated region
        $region53: #{tpu_custom_call.1} parent=51 // pred_check
          %p417 = pneg %p69
        $region54: #{tpu_custom_call.1} parent=51 // pred_check_branch
          %419 = sbr.rel (%p417) target = $region56
        $region55: #{tpu_custom_call.1} parent=51 // pred_region
          %s420 = sand.u32 %s28, 1
          %s421 = scalar_lea.sflag [#allocation8], %s420
          %s422 = sand.u32 %s59, 1
          %s423 = smul.addr %s422, 64
          %s424 = scalar_lea.vmem [#allocation7], %s423
          %s425 = smul.u32 16, %s28
          %427 = vsyncadd %s421, 0
          %s428 = smul.addr %s425, 4
          %s429 = scalar_lea.hbm %s1, %s428
          %s430 = sshll.u32 %s429, 4
          %s431 = int_to_ptr.hbm [resolvable:$true] %s430
          %s432 = sshll.u32 %s424, 4
          %s433 = int_to_ptr.vmem [resolvable:$true] %s432
          %438 = dma.hbm_to_vmem [thread:$0]  %s431, 1024, %s433, %s421, 64, 64, 4
        $region56: #{tpu_custom_call.1} parent=51 // pred_fallthru
          _
        // Predicated region
        $region57: #{tpu_custom_call.1} parent=51 // pred_check
          %p439 = pneg %p95
        $region58: #{tpu_custom_call.1} parent=51 // pred_check_branch
          %441 = sbr.rel (%p439) target = $region60
        $region59: #{tpu_custom_call.1} parent=51 // pred_region
          %s442 = sand.u32 %s28, 1
          %s443 = scalar_lea.sflag [#allocation8], %s442
          %s444 = sand.u32 %s85, 1
          %s445 = scalar_lea.vmem [#allocation9], %s444
          %447 = vsyncadd %s443, 0
          %s448 = scalar_lea.hbm %s2, %s28
          %s450 = sshll.u32 %s448, 4
          %s451 = int_to_ptr.hbm [resolvable:$true] %s450
          %s452 = sshll.u32 %s445, 4
          %s453 = int_to_ptr.vmem [resolvable:$true] %s452
          %455 = dma.hbm_to_vmem [thread:$0]  %s451, 16, %s453, %s443
        $region60: #{tpu_custom_call.1} parent=51 // pred_fallthru
          _
        // Predicated region
        $region61: #{tpu_custom_call.1} parent=51 // pred_check
          %p456 = pneg %p121
        $region62: #{tpu_custom_call.1} parent=51 // pred_check_branch
          %458 = sbr.rel (%p456) target = $region64
        $region63: #{tpu_custom_call.1} parent=51 // pred_region
          %s459 = sand.u32 %s28, 1
          %s460 = scalar_lea.sflag [#allocation11], %s459
          %s461 = sand.u32 %s111, 1
          %s462 = scalar_lea.vmem [#allocation10], %s461
          %464 = vsyncadd %s460, 0
          %s465 = scalar_lea.hbm %s3, %s28
          %s467 = sshll.u32 %s465, 4
          %s468 = int_to_ptr.hbm [resolvable:$true] %s467
          %s469 = sshll.u32 %s462, 4
          %s470 = int_to_ptr.vmem [resolvable:$true] %s469
          %472 = dma.hbm_to_vmem [thread:$0]  %s468, 16, %s470, %s460
        $region64: #{tpu_custom_call.1} parent=51 // pred_fallthru
          _
      $region52: #{tpu_custom_call.1} parent=5 // pred_fallthru
        _
      %p473 = scmp.le.s32.totalorder 1, %s28
      %p474 = scmp.lt.s32.totalorder %s28, 5
      %p475 = pnand %p473, %p474
      %p476 = pneg %p475
      // Predicated region
      $region65: #{tpu_custom_call.1} parent=5 // pred_check
        _
      $region66: #{tpu_custom_call.1} parent=5 // pred_check_branch
        %478 = sbr.rel (%p475) target = $region68
      $region67: #{tpu_custom_call.1} parent=5 // pred_region
        %s479 = ssub.s32 %s28, 1
        // Predicated region
        $region69: #{tpu_custom_call.1} parent=67 // pred_check
          %p480 = pneg %p49
        $region70: #{tpu_custom_call.1} parent=67 // pred_check_branch
          %482 = sbr.rel (%p480) target = $region72
        $region71: #{tpu_custom_call.1} parent=67 // pred_region
          %484 = dma.done [#allocation5], 512
        $region72: #{tpu_custom_call.1} parent=67 // pred_fallthru
          _
        %s485 = sand.u32 %s33, 1
        %s486 = scalar_lea.sflag [#allocation8], %s485
        %s487 = sand.u32 %s62, 1
        %s488 = smul.addr %s487, 64
        %s489 = scalar_lea.vmem [#allocation7], %s488
        // Predicated region
        $region73: #{tpu_custom_call.1} parent=67 // pred_check
          %p490 = pneg %p75
        $region74: #{tpu_custom_call.1} parent=67 // pred_check_branch
          %492 = sbr.rel (%p490) target = $region76
        $region75: #{tpu_custom_call.1} parent=67 // pred_region
          %494 = dma.done %s486, 1024
        $region76: #{tpu_custom_call.1} parent=67 // pred_fallthru
          _
        %s495 = sand.u32 %s33, 1
        %s496 = scalar_lea.sflag [#allocation8], %s495
        %s497 = sand.u32 %s88, 1
        %s498 = scalar_lea.vmem [#allocation9], %s497
        // Predicated region
        $region77: #{tpu_custom_call.1} parent=67 // pred_check
          %p499 = pneg %p101
        $region78: #{tpu_custom_call.1} parent=67 // pred_check_branch
          %501 = sbr.rel (%p499) target = $region80
        $region79: #{tpu_custom_call.1} parent=67 // pred_region
          %503 = dma.done %s496, 16
        $region80: #{tpu_custom_call.1} parent=67 // pred_fallthru
          _
        %s504 = sand.u32 %s33, 1
        %s505 = scalar_lea.sflag [#allocation11], %s504
        %s506 = sand.u32 %s114, 1
        %s507 = scalar_lea.vmem [#allocation10], %s506
        // Predicated region
        $region81: #{tpu_custom_call.1} parent=67 // pred_check
          %p508 = pneg %p127
        $region82: #{tpu_custom_call.1} parent=67 // pred_check_branch
          %510 = sbr.rel (%p508) target = $region84
        $region83: #{tpu_custom_call.1} parent=67 // pred_region
          %512 = dma.done %s505, 16
        $region84: #{tpu_custom_call.1} parent=67 // pred_fallthru
          _
        // Predicated region
        $region85: #{tpu_custom_call.1} parent=67 // pred_check
          %p513 = pneg %p148
        $region86: #{tpu_custom_call.1} parent=67 // pred_check_branch
          %515 = sbr.rel (%p513) target = $region88
        $region87: #{tpu_custom_call.1} parent=67 // pred_region
          %517 = dma.done [#allocation11], 1024
        $region88: #{tpu_custom_call.1} parent=67 // pred_fallthru
          _
        // Predicated region
        $region89: #{tpu_custom_call.1} parent=67 // pred_check
          %p518 = pneg %p190
        $region90: #{tpu_custom_call.1} parent=67 // pred_check_branch
          %520 = sbr.rel (%p518) target = $region92
        $region91: #{tpu_custom_call.1} parent=67 // pred_region
          %522 = dma.done [#allocation14], 1024
        $region92: #{tpu_custom_call.1} parent=67 // pred_fallthru
          _
        // Predicated region
        $region93: #{tpu_custom_call.1} parent=67 // pred_check
          %p523 = pneg %p232
        $region94: #{tpu_custom_call.1} parent=67 // pred_check_branch
          %525 = sbr.rel (%p523) target = $region96
        $region95: #{tpu_custom_call.1} parent=67 // pred_region
          %527 = dma.done [#allocation14], 1024
        $region96: #{tpu_custom_call.1} parent=67 // pred_fallthru
          _
        // Predicated region
        $region97: #{tpu_custom_call.1} parent=67 // pred_check
          %p528 = pneg %p274
        $region98: #{tpu_custom_call.1} parent=67 // pred_check_branch
          %530 = sbr.rel (%p528) target = $region100
        $region99: #{tpu_custom_call.1} parent=67 // pred_region
          %532 = dma.done [#allocation17], 1024
        $region100: #{tpu_custom_call.1} parent=67 // pred_fallthru
          _
        %p533 = pneg %p49
        %p534 = pneg %p46
        %s535 = sand.u32 %s33, 1
        %s536 = scalar_lea.sflag [#allocation8], %s535
        %s537 = sand.u32 %s62, 1
        %s538 = smul.addr %s537, 64
        %s539 = scalar_lea.vmem [#allocation7], %s538
        %p540 = pneg %p75
        %p541 = pneg %p72
        %s542 = sand.u32 %s33, 1
        %s543 = scalar_lea.sflag [#allocation8], %s542
        %s544 = sand.u32 %s88, 1
        %s545 = scalar_lea.vmem [#allocation9], %s544
        %p546 = pneg %p101
        %p547 = pneg %p98
        %s548 = sand.u32 %s33, 1
        %s549 = scalar_lea.sflag [#allocation11], %s548
        %s550 = sand.u32 %s114, 1
        %s551 = scalar_lea.vmem [#allocation10], %s550
        %p552 = pneg %p127
        %p553 = pneg %p124
        %p554 = pneg %p148
        %p555 = pneg %p145
        %p556 = pneg %p169
        %p557 = pneg %p166
        %p558 = pneg %p190
        %p559 = pneg %p187
        %p560 = pneg %p211
        %p561 = pneg %p208
        %p562 = pneg %p232
        %p563 = pneg %p229
        %p564 = pneg %p253
        %p565 = pneg %p250
        %p566 = pneg %p274
        %p567 = pneg %p271
        %p568 = pneg %p295
        %p569 = pneg %p292
        %p570 = pneg %p316
        %p571 = pneg %p313
        %s572 = smul.u32 16, %s33
        %p574 = scmp.eq.s32.totalorder %s33, 0
        // Predicated region
        $region101: #{tpu_custom_call.1} parent=67 // pred_check
          %p575 = pneg %p574
        $region102: #{tpu_custom_call.1} parent=67 // pred_check_branch
          %577 = sbr.rel (%p575) target = $region104
        $region103: #{tpu_custom_call.1} parent=67 // pred_region
          %578 = vst [vmem:[#allocation2] sm:$0xff] 0.0
          %579 = vst [vmem:[#allocation2 + $0x8] sm:$0xff] 0.0
          %580 = vst [vmem:[#allocation2 + $0x10] sm:$0xff] 0.0
          %581 = vst [vmem:[#allocation2 + $0x18] sm:$0xff] 0.0
          %582 = vst [vmem:[#allocation2 + $0x20] sm:$0xff] 0.0
          %583 = vst [vmem:[#allocation2 + $0x28] sm:$0xff] 0.0
          %584 = vst [vmem:[#allocation2 + $0x30] sm:$0xff] 0.0
          %585 = vst [vmem:[#allocation2 + $0x38] sm:$0xff] 0.0
          %v586 = vlaneseq
          %v587 = vshrl.u32 %v586, 7
          %v588 = vadd.s32 %v587, 8
          %v589 = vadd.s32 %v587, 16
          %v590 = vadd.s32 %v587, 24
          %v591 = vadd.s32 %v587, 32
          %v592 = vadd.s32 %v587, 40
          %v593 = vadd.s32 %v587, 48
          %v594 = vadd.s32 %v587, 56
          %595 = vst [vmem:[#allocation3] sm:$0xff] %v587
          %596 = vst [vmem:[#allocation3 + $0x8] sm:$0xff] %v588
          %597 = vst [vmem:[#allocation3 + $0x10] sm:$0xff] %v589
          %598 = vst [vmem:[#allocation3 + $0x18] sm:$0xff] %v590
          %599 = vst [vmem:[#allocation3 + $0x20] sm:$0xff] %v591
          %600 = vst [vmem:[#allocation3 + $0x28] sm:$0xff] %v592
          %601 = vst [vmem:[#allocation3 + $0x30] sm:$0xff] %v593
          %602 = vst [vmem:[#allocation3 + $0x38] sm:$0xff] %v594
        $region104: #{tpu_custom_call.1} parent=67 // pred_fallthru
          _
        %v603 = vld [vmem:[%s489] sm:$0xf]
        %v604 = vld [vmem:[%s489 + $0x4] sm:$0xf]
        %v605 = vld [vmem:[%s489 + $0x8] sm:$0xf]
        %v606 = vld [vmem:[%s489 + $0xc] sm:$0xf]
        %v607 = vld [vmem:[%s489 + $0x10] sm:$0xf]
        %v608 = vld [vmem:[%s489 + $0x14] sm:$0xf]
        %v609 = vld [vmem:[%s489 + $0x18] sm:$0xf]
        %v610 = vld [vmem:[%s489 + $0x1c] sm:$0xf]
        %v611 = vld [vmem:[%s489 + $0x20] sm:$0xf]
        %v612 = vld [vmem:[%s489 + $0x24] sm:$0xf]
        %v613 = vld [vmem:[%s489 + $0x28] sm:$0xf]
        %v614 = vld [vmem:[%s489 + $0x2c] sm:$0xf]
        %v615 = vld [vmem:[%s489 + $0x30] sm:$0xf]
        %v616 = vld [vmem:[%s489 + $0x34] sm:$0xf]
        %v617 = vld [vmem:[%s489 + $0x38] sm:$0xf]
        %v618 = vld [vmem:[%s489 + $0x3c] sm:$0xf]
        %v619 = vld [vmem:[#allocation12] sm:$0xf]
        %v620 = vld [vmem:[#allocation12 + $0x4] sm:$0xf]
        %v621 = vld [vmem:[#allocation12 + $0x8] sm:$0xf]
        %v622 = vld [vmem:[#allocation12 + $0xc] sm:$0xf]
        %v623 = vld [vmem:[#allocation12 + $0x10] sm:$0xf]
        %v624 = vld [vmem:[#allocation12 + $0x14] sm:$0xf]
        %v625 = vld [vmem:[#allocation12 + $0x18] sm:$0xf]
        %v626 = vld [vmem:[#allocation12 + $0x1c] sm:$0xf]
        %v627 = vld [vmem:[#allocation12 + $0x20] sm:$0xf]
        %v628 = vld [vmem:[#allocation12 + $0x24] sm:$0xf]
        %v629 = vld [vmem:[#allocation12 + $0x28] sm:$0xf]
        %v630 = vld [vmem:[#allocation12 + $0x2c] sm:$0xf]
        %v631 = vld [vmem:[#allocation12 + $0x30] sm:$0xf]
        %v632 = vld [vmem:[#allocation12 + $0x34] sm:$0xf]
        %v633 = vld [vmem:[#allocation12 + $0x38] sm:$0xf]
        %v634 = vld [vmem:[#allocation12 + $0x3c] sm:$0xf]
        %v635 = vld [vmem:[%s5] sm:$0x1]
        %v637 = vperm.slane %v635, 0
        %v655 = vunpack.c.l.b16 %v603
        %v656 = vunpack.c.l.b16 %v604
        %v657 = vunpack.c.l.b16 %v605
        %v658 = vunpack.c.l.b16 %v606
        %v659 = vunpack.c.l.b16 %v607
        %v660 = vunpack.c.l.b16 %v608
        %v661 = vunpack.c.l.b16 %v609
        %v662 = vunpack.c.l.b16 %v610
        %v663 = vunpack.c.l.b16 %v611
        %v664 = vunpack.c.l.b16 %v612
        %v665 = vunpack.c.l.b16 %v613
        %v666 = vunpack.c.l.b16 %v614
        %v667 = vunpack.c.l.b16 %v615
        %v668 = vunpack.c.l.b16 %v616
        %v669 = vunpack.c.l.b16 %v617
        %v670 = vunpack.c.l.b16 %v618
        %v671 = vpack.c.b16 %v656, %v655
        %v672 = vpack.c.b16 %v658, %v657
        %v673 = vpack.c.b16 %v660, %v659
        %v674 = vpack.c.b16 %v662, %v661
        %v675 = vpack.c.b16 %v664, %v663
        %v676 = vpack.c.b16 %v666, %v665
        %v677 = vpack.c.b16 %v668, %v667
        %v678 = vpack.c.b16 %v670, %v669
        %v703 = vunpack.c.l.b16 %v619
        %v704 = vunpack.c.l.b16 %v620
        %v705 = vunpack.c.l.b16 %v621
        %v706 = vunpack.c.l.b16 %v622
        %v707 = vunpack.c.l.b16 %v623
        %v708 = vunpack.c.l.b16 %v624
        %v709 = vunpack.c.l.b16 %v625
        %v710 = vunpack.c.l.b16 %v626
        %v711 = vunpack.c.l.b16 %v627
        %v712 = vunpack.c.l.b16 %v628
        %v713 = vunpack.c.l.b16 %v629
        %v714 = vunpack.c.l.b16 %v630
        %v715 = vunpack.c.l.b16 %v631
        %v716 = vunpack.c.l.b16 %v632
        %v717 = vunpack.c.l.b16 %v633
        %v718 = vunpack.c.l.b16 %v634
        %v719 = vpack.c.b16 %v704, %v703
        %v720 = vpack.c.b16 %v706, %v705
        %v721 = vpack.c.b16 %v708, %v707
        %v722 = vpack.c.b16 %v710, %v709
        %v723 = vpack.c.b16 %v712, %v711
        %v724 = vpack.c.b16 %v714, %v713
        %v725 = vpack.c.b16 %v716, %v715
        %v726 = vpack.c.b16 %v718, %v717
        %735 = vmatpush.bf16.msra.mxu0 %v726
        %736 = vmatpush.bf16.msra.mxu0 %v725
        %737 = vmatpush.bf16.msra.mxu0 %v724
        %738 = vmatpush.bf16.msra.mxu0 %v723
        %739 = vmatpush.bf16.msra.mxu0 %v722
        %740 = vmatpush.bf16.msra.mxu0 %v721
        %741 = vmatpush.bf16.msra.mxu0 %v720
        %742 = vmatpush.bf16.msra.mxu0 %v719
        %743 = vmatmul.bf16.gmra.mxu0 %v671
        %v744 = vpop.f32.mrf.mxu0
        %v745 = vadd.f32 %v637, %v744
        %v746 = vpop.f32.mrf.mxu0
        %v747 = vadd.f32 %v637, %v746
        %748 = vmatmul.bf16.gmra.mxu0 %v672
        %v749 = vpop.f32.mrf.mxu0
        %v750 = vadd.f32 %v637, %v749
        %v751 = vpop.f32.mrf.mxu0
        %v752 = vadd.f32 %v637, %v751
        %753 = vmatmul.bf16.gmra.mxu0 %v673
        %v754 = vpop.f32.mrf.mxu0
        %v755 = vadd.f32 %v637, %v754
        %v756 = vpop.f32.mrf.mxu0
        %v757 = vadd.f32 %v637, %v756
        %758 = vmatmul.bf16.gmra.mxu0 %v674
        %v759 = vpop.f32.mrf.mxu0
        %v760 = vadd.f32 %v637, %v759
        %v761 = vpop.f32.mrf.mxu0
        %v762 = vadd.f32 %v637, %v761
        %763 = vmatmul.bf16.gmra.mxu0 %v675
        %v764 = vpop.f32.mrf.mxu0
        %v765 = vadd.f32 %v637, %v764
        %v766 = vpop.f32.mrf.mxu0
        %v767 = vadd.f32 %v637, %v766
        %768 = vmatmul.bf16.gmra.mxu0 %v676
        %v769 = vpop.f32.mrf.mxu0
        %v770 = vadd.f32 %v637, %v769
        %v771 = vpop.f32.mrf.mxu0
        %v772 = vadd.f32 %v637, %v771
        %773 = vmatmul.bf16.gmra.mxu0 %v677
        %v774 = vpop.f32.mrf.mxu0
        %v775 = vadd.f32 %v637, %v774
        %v776 = vpop.f32.mrf.mxu0
        %v777 = vadd.f32 %v637, %v776
        %778 = vmatmul.bf16.gmra.mxu0 %v678
        %v779 = vpop.f32.mrf.mxu0
        %v780 = vadd.f32 %v637, %v779
        %v781 = vpop.f32.mrf.mxu0
        %v782 = vadd.f32 %v637, %v781
        %783 = vdwg.mxu0
        %v784 = vmax.f32 %v745, 0.0
        %v785 = vmax.f32 %v747, 0.0
        %v786 = vmax.f32 %v750, 0.0
        %v787 = vmax.f32 %v752, 0.0
        %v788 = vmax.f32 %v755, 0.0
        %v789 = vmax.f32 %v757, 0.0
        %v790 = vmax.f32 %v760, 0.0
        %v791 = vmax.f32 %v762, 0.0
        %v792 = vmax.f32 %v765, 0.0
        %v793 = vmax.f32 %v767, 0.0
        %v794 = vmax.f32 %v770, 0.0
        %v795 = vmax.f32 %v772, 0.0
        %v796 = vmax.f32 %v775, 0.0
        %v797 = vmax.f32 %v777, 0.0
        %v798 = vmax.f32 %v780, 0.0
        %v799 = vmax.f32 %v782, 0.0
        %v800 = vpack.c.bf16 %v785, %v784
        %v801 = vpack.c.bf16 %v787, %v786
        %v802 = vpack.c.bf16 %v789, %v788
        %v803 = vpack.c.bf16 %v791, %v790
        %v804 = vpack.c.bf16 %v793, %v792
        %v805 = vpack.c.bf16 %v795, %v794
        %v806 = vpack.c.bf16 %v797, %v796
        %v807 = vpack.c.bf16 %v799, %v798
        %v808 = vld [vmem:[#allocation13] sm:$0xf]
        %v809 = vld [vmem:[#allocation13 + $0x4] sm:$0xf]
        %v810 = vld [vmem:[#allocation13 + $0x8] sm:$0xf]
        %v811 = vld [vmem:[#allocation13 + $0xc] sm:$0xf]
        %v812 = vld [vmem:[#allocation13 + $0x10] sm:$0xf]
        %v813 = vld [vmem:[#allocation13 + $0x14] sm:$0xf]
        %v814 = vld [vmem:[#allocation13 + $0x18] sm:$0xf]
        %v815 = vld [vmem:[#allocation13 + $0x1c] sm:$0xf]
        %v816 = vld [vmem:[#allocation13 + $0x20] sm:$0xf]
        %v817 = vld [vmem:[#allocation13 + $0x24] sm:$0xf]
        %v818 = vld [vmem:[#allocation13 + $0x28] sm:$0xf]
        %v819 = vld [vmem:[#allocation13 + $0x2c] sm:$0xf]
        %v820 = vld [vmem:[#allocation13 + $0x30] sm:$0xf]
        %v821 = vld [vmem:[#allocation13 + $0x34] sm:$0xf]
        %v822 = vld [vmem:[#allocation13 + $0x38] sm:$0xf]
        %v823 = vld [vmem:[#allocation13 + $0x3c] sm:$0xf]
        %v824 = vld [vmem:[%s7] sm:$0x1]
        %v826 = vperm.slane %v824, 0
        %v844 = vunpack.c.l.b16 %v808
        %v845 = vunpack.c.l.b16 %v809
        %v846 = vunpack.c.l.b16 %v810
        %v847 = vunpack.c.l.b16 %v811
        %v848 = vunpack.c.l.b16 %v812
        %v849 = vunpack.c.l.b16 %v813
        %v850 = vunpack.c.l.b16 %v814
        %v851 = vunpack.c.l.b16 %v815
        %v852 = vunpack.c.l.b16 %v816
        %v853 = vunpack.c.l.b16 %v817
        %v854 = vunpack.c.l.b16 %v818
        %v855 = vunpack.c.l.b16 %v819
        %v856 = vunpack.c.l.b16 %v820
        %v857 = vunpack.c.l.b16 %v821
        %v858 = vunpack.c.l.b16 %v822
        %v859 = vunpack.c.l.b16 %v823
        %v860 = vpack.c.b16 %v845, %v844
        %v861 = vpack.c.b16 %v847, %v846
        %v862 = vpack.c.b16 %v849, %v848
        %v863 = vpack.c.b16 %v851, %v850
        %v864 = vpack.c.b16 %v853, %v852
        %v865 = vpack.c.b16 %v855, %v854
        %v866 = vpack.c.b16 %v857, %v856
        %v867 = vpack.c.b16 %v859, %v858
        %876 = vmatpush.bf16.msra.mxu0 %v867
        %877 = vmatpush.bf16.msra.mxu0 %v866
        %878 = vmatpush.bf16.msra.mxu0 %v865
        %879 = vmatpush.bf16.msra.mxu0 %v864
        %880 = vmatpush.bf16.msra.mxu0 %v863
        %881 = vmatpush.bf16.msra.mxu0 %v862
        %882 = vmatpush.bf16.msra.mxu0 %v861
        %883 = vmatpush.bf16.msra.mxu0 %v860
        %884 = vmatmul.bf16.gmra.mxu0 %v800
        %v885 = vpop.f32.mrf.mxu0
        %v886 = vadd.f32 %v826, %v885
        %v887 = vpop.f32.mrf.mxu0
        %v888 = vadd.f32 %v826, %v887
        %889 = vmatmul.bf16.gmra.mxu0 %v801
        %v890 = vpop.f32.mrf.mxu0
        %v891 = vadd.f32 %v826, %v890
        %v892 = vpop.f32.mrf.mxu0
        %v893 = vadd.f32 %v826, %v892
        %894 = vmatmul.bf16.gmra.mxu0 %v802
        %v895 = vpop.f32.mrf.mxu0
        %v896 = vadd.f32 %v826, %v895
        %v897 = vpop.f32.mrf.mxu0
        %v898 = vadd.f32 %v826, %v897
        %899 = vmatmul.bf16.gmra.mxu0 %v803
        %v900 = vpop.f32.mrf.mxu0
        %v901 = vadd.f32 %v826, %v900
        %v902 = vpop.f32.mrf.mxu0
        %v903 = vadd.f32 %v826, %v902
        %904 = vmatmul.bf16.gmra.mxu0 %v804
        %v905 = vpop.f32.mrf.mxu0
        %v906 = vadd.f32 %v826, %v905
        %v907 = vpop.f32.mrf.mxu0
        %v908 = vadd.f32 %v826, %v907
        %909 = vmatmul.bf16.gmra.mxu0 %v805
        %v910 = vpop.f32.mrf.mxu0
        %v911 = vadd.f32 %v826, %v910
        %v912 = vpop.f32.mrf.mxu0
        %v913 = vadd.f32 %v826, %v912
        %914 = vmatmul.bf16.gmra.mxu0 %v806
        %v915 = vpop.f32.mrf.mxu0
        %v916 = vadd.f32 %v826, %v915
        %v917 = vpop.f32.mrf.mxu0
        %v918 = vadd.f32 %v826, %v917
        %919 = vmatmul.bf16.gmra.mxu0 %v807
        %v920 = vpop.f32.mrf.mxu0
        %v921 = vadd.f32 %v826, %v920
        %v922 = vpop.f32.mrf.mxu0
        %v923 = vadd.f32 %v826, %v922
        %924 = vdwg.mxu0
        %v925 = vld [vmem:[#allocation3] sm:$0xff]
        %v926 = vld [vmem:[#allocation3 + $0x8] sm:$0xff]
        %v927 = vld [vmem:[#allocation3 + $0x10] sm:$0xff]
        %v928 = vld [vmem:[#allocation3 + $0x18] sm:$0xff]
        %v929 = vld [vmem:[#allocation3 + $0x20] sm:$0xff]
        %v930 = vld [vmem:[#allocation3 + $0x28] sm:$0xff]
        %v931 = vld [vmem:[#allocation3 + $0x30] sm:$0xff]
        %v932 = vld [vmem:[#allocation3 + $0x38] sm:$0xff]
        %v933 = vld [vmem:[%s498] sm:$0x1]
        %v934 = vperm.slane %v933, 0
        %vm935 = vcmp.eq.s32.totalorder %v925, %v934
        %vm936 = vcmp.eq.s32.totalorder %v926, %v934
        %vm937 = vcmp.eq.s32.totalorder %v927, %v934
        %vm938 = vcmp.eq.s32.totalorder %v928, %v934
        %vm939 = vcmp.eq.s32.totalorder %v929, %v934
        %vm940 = vcmp.eq.s32.totalorder %v930, %v934
        %vm941 = vcmp.eq.s32.totalorder %v931, %v934
        %vm942 = vcmp.eq.s32.totalorder %v932, %v934
        %v943 = vsel %vm935, 1, 0
        %v944 = vsel %vm936, 1, 0
        %v945 = vsel %vm937, 1, 0
        %v946 = vsel %vm938, 1, 0
        %v947 = vsel %vm939, 1, 0
        %v948 = vsel %vm940, 1, 0
        %v949 = vsel %vm941, 1, 0
        %v950 = vsel %vm942, 1, 0
        %v951 = vcvt.s32.f32 %v943
        %v952 = vcvt.s32.f32 %v944
        %v953 = vcvt.s32.f32 %v945
        %v954 = vcvt.s32.f32 %v946
        %v955 = vcvt.s32.f32 %v947
        %v956 = vcvt.s32.f32 %v948
        %v957 = vcvt.s32.f32 %v949
        %v958 = vcvt.s32.f32 %v950
        %v959 = vpack.c.bf16 %v952, %v951
        %v960 = vpack.c.bf16 %v954, %v953
        %v961 = vpack.c.bf16 %v956, %v955
        %v962 = vpack.c.bf16 %v958, %v957
        %v963 = vld [vmem:[%s507] sm:$0x1]
        %v964 = vperm.slane %v963, 0
        %vm965 = vcmp.eq.s32.totalorder %v925, %v964
        %vm966 = vcmp.eq.s32.totalorder %v926, %v964
        %vm967 = vcmp.eq.s32.totalorder %v927, %v964
        %vm968 = vcmp.eq.s32.totalorder %v928, %v964
        %vm969 = vcmp.eq.s32.totalorder %v929, %v964
        %vm970 = vcmp.eq.s32.totalorder %v930, %v964
        %vm971 = vcmp.eq.s32.totalorder %v931, %v964
        %vm972 = vcmp.eq.s32.totalorder %v932, %v964
        %v973 = vsel %vm965, 1, 0
        %v974 = vsel %vm966, 1, 0
        %v975 = vsel %vm967, 1, 0
        %v976 = vsel %vm968, 1, 0
        %v977 = vsel %vm969, 1, 0
        %v978 = vsel %vm970, 1, 0
        %v979 = vsel %vm971, 1, 0
        %v980 = vsel %vm972, 1, 0
        %v981 = vcvt.s32.f32 %v973
        %v982 = vcvt.s32.f32 %v974
        %v983 = vcvt.s32.f32 %v975
        %v984 = vcvt.s32.f32 %v976
        %v985 = vcvt.s32.f32 %v977
        %v986 = vcvt.s32.f32 %v978
        %v987 = vcvt.s32.f32 %v979
        %v988 = vcvt.s32.f32 %v980
        %v989 = vpack.c.bf16 %v982, %v981
        %v990 = vpack.c.bf16 %v984, %v983
        %v991 = vpack.c.bf16 %v986, %v985
        %v992 = vpack.c.bf16 %v988, %v987
        %v993 = vld [vmem:[#allocation4] sm:$0xf]
        %v994 = vld [vmem:[#allocation4 + $0x4] sm:$0xf]
        %v995 = vld [vmem:[#allocation4 + $0x8] sm:$0xf]
        %v996 = vld [vmem:[#allocation4 + $0xc] sm:$0xf]
        %v997 = vld [vmem:[#allocation4 + $0x10] sm:$0xf]
        %v998 = vld [vmem:[#allocation4 + $0x14] sm:$0xf]
        %v999 = vld [vmem:[#allocation4 + $0x18] sm:$0xf]
        %v1000 = vld [vmem:[#allocation4 + $0x1c] sm:$0xf]
        %1001 = vxpose.xlu0.c.b16.start [1/8] %v959, 128
        %1002 = vxpose.xlu0.c.b16.cont [2/8] %v960, 128
        %1003 = vxpose.xlu0.c.b16.cont [3/8] %v961, 128
        %1004 = vxpose.xlu0.c.b16.cont [4/8] %v962, 128
        %1005 = vxpose.xlu0.c.b16.cont [5/8] 0, 128
        %1006 = vxpose.xlu0.c.b16.cont [6/8] 0, 128
        %1007 = vxpose.xlu0.c.b16.cont [7/8] 0, 128
        %1008 = vxpose.xlu0.c.b16.end [8/8] 0, 128
        %v1009 = vpop.trf.xlu0
        %v1010 = vpop.trf.xlu0
        %v1011 = vpop.trf.xlu0
        %v1012 = vpop.trf.xlu0
        %v1013 = vpop.trf.xlu0
        %v1014 = vpop.trf.xlu0
        %v1015 = vpop.trf.xlu0
        %v1016 = vpop.trf.xlu0
        %v1025 = vunpack.c.l.b16 %v993
        %v1026 = vunpack.c.l.b16 %v994
        %v1027 = vunpack.c.l.b16 %v995
        %v1028 = vunpack.c.l.b16 %v996
        %v1029 = vunpack.c.l.b16 %v997
        %v1030 = vunpack.c.l.b16 %v998
        %v1031 = vunpack.c.l.b16 %v999
        %v1032 = vunpack.c.l.b16 %v1000
        %v1033 = vpack.c.b16 %v1026, %v1025
        %v1034 = vpack.c.b16 %v1028, %v1027
        %v1035 = vpack.c.b16 %v1030, %v1029
        %v1036 = vpack.c.b16 %v1032, %v1031
        %vm1041 = vcmask 523264
        %v1043 = vsel %vm1041, %v1009, 0
        %v1046 = vsel %vm1041, %v1010, 0
        %v1049 = vsel %vm1041, %v1011, 0
        %v1052 = vsel %vm1041, %v1012, 0
        %v1055 = vsel %vm1041, %v1013, 0
        %v1058 = vsel %vm1041, %v1014, 0
        %v1061 = vsel %vm1041, %v1015, 0
        %v1064 = vsel %vm1041, %v1016, 0
        %1066 = vmatpush.bf16.msra.mxu0 0
        %1067 = vmatpush.bf16.msra.mxu0 0
        %1068 = vmatpush.bf16.msra.mxu0 0
        %1069 = vmatpush.bf16.msra.mxu0 0
        %1070 = vmatpush.bf16.msra.mxu0 %v1036
        %1071 = vmatpush.bf16.msra.mxu0 %v1035
        %1072 = vmatpush.bf16.msra.mxu0 %v1034
        %1073 = vmatpush.bf16.msra.mxu0 %v1033
        %1074 = vmatmul.bf16.gmra.mxu0 %v1043
        %v1075 = vpop.f32.mrf.mxu0
        %v1076 = vadd.f32 0.0, %v1075
        %v1077 = vpop.f32.mrf.mxu0
        %v1078 = vadd.f32 0.0, %v1077
        %1079 = vmatmul.bf16.gmra.mxu0 %v1046
        %v1080 = vpop.f32.mrf.mxu0
        %v1081 = vadd.f32 0.0, %v1080
        %v1082 = vpop.f32.mrf.mxu0
        %v1083 = vadd.f32 0.0, %v1082
        %1084 = vmatmul.bf16.gmra.mxu0 %v1049
        %v1085 = vpop.f32.mrf.mxu0
        %v1086 = vadd.f32 0.0, %v1085
        %v1087 = vpop.f32.mrf.mxu0
        %v1088 = vadd.f32 0.0, %v1087
        %1089 = vmatmul.bf16.gmra.mxu0 %v1052
        %v1090 = vpop.f32.mrf.mxu0
        %v1091 = vadd.f32 0.0, %v1090
        %v1092 = vpop.f32.mrf.mxu0
        %v1093 = vadd.f32 0.0, %v1092
        %1094 = vmatmul.bf16.gmra.mxu0 %v1055
        %v1095 = vpop.f32.mrf.mxu0
        %v1096 = vadd.f32 0.0, %v1095
        %v1097 = vpop.f32.mrf.mxu0
        %v1098 = vadd.f32 0.0, %v1097
        %1099 = vmatmul.bf16.gmra.mxu0 %v1058
        %v1100 = vpop.f32.mrf.mxu0
        %v1101 = vadd.f32 0.0, %v1100
        %v1102 = vpop.f32.mrf.mxu0
        %v1103 = vadd.f32 0.0, %v1102
        %1104 = vmatmul.bf16.gmra.mxu0 %v1061
        %v1105 = vpop.f32.mrf.mxu0
        %v1106 = vadd.f32 0.0, %v1105
        %v1107 = vpop.f32.mrf.mxu0
        %v1108 = vadd.f32 0.0, %v1107
        %1109 = vmatmul.bf16.gmra.mxu0 %v1064
        %v1110 = vpop.f32.mrf.mxu0
        %v1111 = vadd.f32 0.0, %v1110
        %v1112 = vpop.f32.mrf.mxu0
        %v1113 = vadd.f32 0.0, %v1112
        %1114 = vdwg.mxu0
        %v1115 = vmul.f32 %v1076, %v886
        %v1116 = vmul.f32 %v1078, %v888
        %v1117 = vmul.f32 %v1081, %v891
        %v1118 = vmul.f32 %v1083, %v893
        %v1119 = vmul.f32 %v1086, %v896
        %v1120 = vmul.f32 %v1088, %v898
        %v1121 = vmul.f32 %v1091, %v901
        %v1122 = vmul.f32 %v1093, %v903
        %v1123 = vmul.f32 %v1096, %v906
        %v1124 = vmul.f32 %v1098, %v908
        %v1125 = vmul.f32 %v1101, %v911
        %v1126 = vmul.f32 %v1103, %v913
        %v1127 = vmul.f32 %v1106, %v916
        %v1128 = vmul.f32 %v1108, %v918
        %v1129 = vmul.f32 %v1111, %v921
        %v1130 = vmul.f32 %v1113, %v923
        %v1131 = vpack.c.bf16 %v1116, %v1115
        %v1132 = vpack.c.bf16 %v1118, %v1117
        %v1133 = vpack.c.bf16 %v1120, %v1119
        %v1134 = vpack.c.bf16 %v1122, %v1121
        %v1135 = vpack.c.bf16 %v1124, %v1123
        %v1136 = vpack.c.bf16 %v1126, %v1125
        %v1137 = vpack.c.bf16 %v1128, %v1127
        %v1138 = vpack.c.bf16 %v1130, %v1129
        %v1139 = vld [vmem:[#allocation2] sm:$0xff]
        %v1140 = vld [vmem:[#allocation2 + $0x8] sm:$0xff]
        %v1141 = vld [vmem:[#allocation2 + $0x10] sm:$0xff]
        %v1142 = vld [vmem:[#allocation2 + $0x18] sm:$0xff]
        %v1143 = vld [vmem:[#allocation2 + $0x20] sm:$0xff]
        %v1144 = vld [vmem:[#allocation2 + $0x28] sm:$0xff]
        %v1145 = vld [vmem:[#allocation2 + $0x30] sm:$0xff]
        %v1146 = vld [vmem:[#allocation2 + $0x38] sm:$0xff]
        %1147 = vmatpush.bf16.msra.mxu0 %v1138
        %1148 = vmatpush.bf16.msra.mxu0 %v1137
        %1149 = vmatpush.bf16.msra.mxu0 %v1136
        %1150 = vmatpush.bf16.msra.mxu0 %v1135
        %1151 = vmatpush.bf16.msra.mxu0 %v1134
        %1152 = vmatpush.bf16.msra.mxu0 %v1133
        %1153 = vmatpush.bf16.msra.mxu0 %v1132
        %1154 = vmatpush.bf16.msra.mxu0 %v1131
        %1155 = vmatmul.bf16.gmra.mxu0 %v989
        %v1156 = vpop.f32.mrf.mxu0
        %v1157 = vadd.f32 0.0, %v1156
        %v1158 = vpop.f32.mrf.mxu0
        %v1159 = vadd.f32 0.0, %v1158
        %1160 = vmatmul.bf16.gmra.mxu0 %v990
        %v1161 = vpop.f32.mrf.mxu0
        %v1162 = vadd.f32 0.0, %v1161
        %v1163 = vpop.f32.mrf.mxu0
        %v1164 = vadd.f32 0.0, %v1163
        %1165 = vmatmul.bf16.gmra.mxu0 %v991
        %v1166 = vpop.f32.mrf.mxu0
        %v1167 = vadd.f32 0.0, %v1166
        %v1168 = vpop.f32.mrf.mxu0
        %v1169 = vadd.f32 0.0, %v1168
        %1170 = vmatmul.bf16.gmra.mxu0 %v992
        %v1171 = vpop.f32.mrf.mxu0
        %v1172 = vadd.f32 0.0, %v1171
        %v1173 = vpop.f32.mrf.mxu0
        %v1174 = vadd.f32 0.0, %v1173
        %1175 = vdwg.mxu0
        %v1176 = vadd.f32 %v1139, %v1157
        %v1177 = vadd.f32 %v1140, %v1159
        %v1178 = vadd.f32 %v1141, %v1162
        %v1179 = vadd.f32 %v1142, %v1164
        %v1180 = vadd.f32 %v1143, %v1167
        %v1181 = vadd.f32 %v1144, %v1169
        %v1182 = vadd.f32 %v1145, %v1172
        %v1183 = vadd.f32 %v1146, %v1174
        %1184 = vst [vmem:[#allocation2] sm:$0xff] %v1176
        %1185 = vst [vmem:[#allocation2 + $0x8] sm:$0xff] %v1177
        %1186 = vst [vmem:[#allocation2 + $0x10] sm:$0xff] %v1178
        %1187 = vst [vmem:[#allocation2 + $0x18] sm:$0xff] %v1179
        %1188 = vst [vmem:[#allocation2 + $0x20] sm:$0xff] %v1180
        %1189 = vst [vmem:[#allocation2 + $0x28] sm:$0xff] %v1181
        %1190 = vst [vmem:[#allocation2 + $0x30] sm:$0xff] %v1182
        %1191 = vst [vmem:[#allocation2 + $0x38] sm:$0xff] %v1183
        %p1192 = scmp.eq.s32.totalorder %s33, 3
        // Predicated region
        $region105: #{tpu_custom_call.1} parent=67 // pred_check
          %p1193 = pneg %p1192
        $region106: #{tpu_custom_call.1} parent=67 // pred_check_branch
          %1195 = sbr.rel (%p1193) target = $region108
        $region107: #{tpu_custom_call.1} parent=67 // pred_region
          %v1196 = vld [vmem:[#allocation2] sm:$0xff]
          %v1197 = vld [vmem:[#allocation2 + $0x8] sm:$0xff]
          %v1198 = vld [vmem:[#allocation2 + $0x10] sm:$0xff]
          %v1199 = vld [vmem:[#allocation2 + $0x18] sm:$0xff]
          %v1200 = vld [vmem:[#allocation2 + $0x20] sm:$0xff]
          %v1201 = vld [vmem:[#allocation2 + $0x28] sm:$0xff]
          %v1202 = vld [vmem:[#allocation2 + $0x30] sm:$0xff]
          %v1203 = vld [vmem:[#allocation2 + $0x38] sm:$0xff]
          %v1204 = vpack.c.bf16 %v1197, %v1196
          %v1205 = vpack.c.bf16 %v1199, %v1198
          %v1206 = vpack.c.bf16 %v1201, %v1200
          %v1207 = vpack.c.bf16 %v1203, %v1202
          %v1208 = vld [vmem:[#allocation15] sm:$0xf]
          %v1209 = vld [vmem:[#allocation15 + $0x4] sm:$0xf]
          %v1210 = vld [vmem:[#allocation15 + $0x8] sm:$0xf]
          %v1211 = vld [vmem:[#allocation15 + $0xc] sm:$0xf]
          %v1212 = vld [vmem:[#allocation15 + $0x10] sm:$0xf]
          %v1213 = vld [vmem:[#allocation15 + $0x14] sm:$0xf]
          %v1214 = vld [vmem:[#allocation15 + $0x18] sm:$0xf]
          %v1215 = vld [vmem:[#allocation15 + $0x1c] sm:$0xf]
          %v1216 = vld [vmem:[#allocation15 + $0x20] sm:$0xf]
          %v1217 = vld [vmem:[#allocation15 + $0x24] sm:$0xf]
          %v1218 = vld [vmem:[#allocation15 + $0x28] sm:$0xf]
          %v1219 = vld [vmem:[#allocation15 + $0x2c] sm:$0xf]
          %v1220 = vld [vmem:[#allocation15 + $0x30] sm:$0xf]
          %v1221 = vld [vmem:[#allocation15 + $0x34] sm:$0xf]
          %v1222 = vld [vmem:[#allocation15 + $0x38] sm:$0xf]
          %v1223 = vld [vmem:[#allocation15 + $0x3c] sm:$0xf]
          %v1224 = vld [vmem:[%s9] sm:$0x1]
          %v1226 = vperm.slane %v1224, 0
          %v1244 = vunpack.c.l.b16 %v1208
          %v1245 = vunpack.c.l.b16 %v1209
          %v1246 = vunpack.c.l.b16 %v1210
          %v1247 = vunpack.c.l.b16 %v1211
          %v1248 = vunpack.c.l.b16 %v1212
          %v1249 = vunpack.c.l.b16 %v1213
          %v1250 = vunpack.c.l.b16 %v1214
          %v1251 = vunpack.c.l.b16 %v1215
          %v1252 = vunpack.c.l.b16 %v1216
          %v1253 = vunpack.c.l.b16 %v1217
          %v1254 = vunpack.c.l.b16 %v1218
          %v1255 = vunpack.c.l.b16 %v1219
          %v1256 = vunpack.c.l.b16 %v1220
          %v1257 = vunpack.c.l.b16 %v1221
          %v1258 = vunpack.c.l.b16 %v1222
          %v1259 = vunpack.c.l.b16 %v1223
          %v1260 = vpack.c.b16 %v1245, %v1244
          %v1261 = vpack.c.b16 %v1247, %v1246
          %v1262 = vpack.c.b16 %v1249, %v1248
          %v1263 = vpack.c.b16 %v1251, %v1250
          %v1264 = vpack.c.b16 %v1253, %v1252
          %v1265 = vpack.c.b16 %v1255, %v1254
          %v1266 = vpack.c.b16 %v1257, %v1256
          %v1267 = vpack.c.b16 %v1259, %v1258
          %1276 = vmatpush.bf16.msra.mxu0 %v1267
          %1277 = vmatpush.bf16.msra.mxu0 %v1266
          %1278 = vmatpush.bf16.msra.mxu0 %v1265
          %1279 = vmatpush.bf16.msra.mxu0 %v1264
          %1280 = vmatpush.bf16.msra.mxu0 %v1263
          %1281 = vmatpush.bf16.msra.mxu0 %v1262
          %1282 = vmatpush.bf16.msra.mxu0 %v1261
          %1283 = vmatpush.bf16.msra.mxu0 %v1260
          %1284 = vmatmul.bf16.gmra.mxu0 %v1204
          %v1285 = vpop.f32.mrf.mxu0
          %v1286 = vadd.f32 %v1226, %v1285
          %v1287 = vpop.f32.mrf.mxu0
          %v1288 = vadd.f32 %v1226, %v1287
          %1289 = vmatmul.bf16.gmra.mxu0 %v1205
          %v1290 = vpop.f32.mrf.mxu0
          %v1291 = vadd.f32 %v1226, %v1290
          %v1292 = vpop.f32.mrf.mxu0
          %v1293 = vadd.f32 %v1226, %v1292
          %1294 = vmatmul.bf16.gmra.mxu0 %v1206
          %v1295 = vpop.f32.mrf.mxu0
          %v1296 = vadd.f32 %v1226, %v1295
          %v1297 = vpop.f32.mrf.mxu0
          %v1298 = vadd.f32 %v1226, %v1297
          %1299 = vmatmul.bf16.gmra.mxu0 %v1207
          %v1300 = vpop.f32.mrf.mxu0
          %v1301 = vadd.f32 %v1226, %v1300
          %v1302 = vpop.f32.mrf.mxu0
          %v1303 = vadd.f32 %v1226, %v1302
          %1304 = vdwg.mxu0
          %v1305 = vmax.f32 %v1286, 0.0
          %v1306 = vmax.f32 %v1288, 0.0
          %v1307 = vmax.f32 %v1291, 0.0
          %v1308 = vmax.f32 %v1293, 0.0
          %v1309 = vmax.f32 %v1296, 0.0
          %v1310 = vmax.f32 %v1298, 0.0
          %v1311 = vmax.f32 %v1301, 0.0
          %v1312 = vmax.f32 %v1303, 0.0
          %v1313 = vpack.c.bf16 %v1306, %v1305
          %v1314 = vpack.c.bf16 %v1308, %v1307
          %v1315 = vpack.c.bf16 %v1310, %v1309
          %v1316 = vpack.c.bf16 %v1312, %v1311
          %v1317 = vld [vmem:[#allocation16] sm:$0xf]
          %v1318 = vld [vmem:[#allocation16 + $0x4] sm:$0xf]
          %v1319 = vld [vmem:[#allocation16 + $0x8] sm:$0xf]
          %v1320 = vld [vmem:[#allocation16 + $0xc] sm:$0xf]
          %v1321 = vld [vmem:[#allocation16 + $0x10] sm:$0xf]
          %v1322 = vld [vmem:[#allocation16 + $0x14] sm:$0xf]
          %v1323 = vld [vmem:[#allocation16 + $0x18] sm:$0xf]
          %v1324 = vld [vmem:[#allocation16 + $0x1c] sm:$0xf]
          %v1325 = vld [vmem:[#allocation16 + $0x20] sm:$0xf]
          %v1326 = vld [vmem:[#allocation16 + $0x24] sm:$0xf]
          %v1327 = vld [vmem:[#allocation16 + $0x28] sm:$0xf]
          %v1328 = vld [vmem:[#allocation16 + $0x2c] sm:$0xf]
          %v1329 = vld [vmem:[#allocation16 + $0x30] sm:$0xf]
          %v1330 = vld [vmem:[#allocation16 + $0x34] sm:$0xf]
          %v1331 = vld [vmem:[#allocation16 + $0x38] sm:$0xf]
          %v1332 = vld [vmem:[#allocation16 + $0x3c] sm:$0xf]
          %v1333 = vld [vmem:[%s11] sm:$0x1]
          %v1335 = vperm.slane %v1333, 0
          %v1353 = vunpack.c.l.b16 %v1317
          %v1354 = vunpack.c.l.b16 %v1318
          %v1355 = vunpack.c.l.b16 %v1319
          %v1356 = vunpack.c.l.b16 %v1320
          %v1357 = vunpack.c.l.b16 %v1321
          %v1358 = vunpack.c.l.b16 %v1322
          %v1359 = vunpack.c.l.b16 %v1323
          %v1360 = vunpack.c.l.b16 %v1324
          %v1361 = vunpack.c.l.b16 %v1325
          %v1362 = vunpack.c.l.b16 %v1326
          %v1363 = vunpack.c.l.b16 %v1327
          %v1364 = vunpack.c.l.b16 %v1328
          %v1365 = vunpack.c.l.b16 %v1329
          %v1366 = vunpack.c.l.b16 %v1330
          %v1367 = vunpack.c.l.b16 %v1331
          %v1368 = vunpack.c.l.b16 %v1332
          %v1369 = vpack.c.b16 %v1354, %v1353
          %v1370 = vpack.c.b16 %v1356, %v1355
          %v1371 = vpack.c.b16 %v1358, %v1357
          %v1372 = vpack.c.b16 %v1360, %v1359
          %v1373 = vpack.c.b16 %v1362, %v1361
          %v1374 = vpack.c.b16 %v1364, %v1363
          %v1375 = vpack.c.b16 %v1366, %v1365
          %v1376 = vpack.c.b16 %v1368, %v1367
          %1385 = vmatpush.bf16.msra.mxu0 %v1376
          %1386 = vmatpush.bf16.msra.mxu0 %v1375
          %1387 = vmatpush.bf16.msra.mxu0 %v1374
          %1388 = vmatpush.bf16.msra.mxu0 %v1373
          %1389 = vmatpush.bf16.msra.mxu0 %v1372
          %1390 = vmatpush.bf16.msra.mxu0 %v1371
          %1391 = vmatpush.bf16.msra.mxu0 %v1370
          %1392 = vmatpush.bf16.msra.mxu0 %v1369
          %1393 = vmatmul.bf16.gmra.mxu0 %v1313
          %v1394 = vpop.f32.mrf.mxu0
          %v1395 = vadd.f32 %v1335, %v1394
          %v1396 = vpop.f32.mrf.mxu0
          %v1397 = vadd.f32 %v1335, %v1396
          %1398 = vmatmul.bf16.gmra.mxu0 %v1314
          %v1399 = vpop.f32.mrf.mxu0
          %v1400 = vadd.f32 %v1335, %v1399
          %v1401 = vpop.f32.mrf.mxu0
          %v1402 = vadd.f32 %v1335, %v1401
          %1403 = vmatmul.bf16.gmra.mxu0 %v1315
          %v1404 = vpop.f32.mrf.mxu0
          %v1405 = vadd.f32 %v1335, %v1404
          %v1406 = vpop.f32.mrf.mxu0
          %v1407 = vadd.f32 %v1335, %v1406
          %1408 = vmatmul.bf16.gmra.mxu0 %v1316
          %v1409 = vpop.f32.mrf.mxu0
          %v1410 = vadd.f32 %v1335, %v1409
          %v1411 = vpop.f32.mrf.mxu0
          %v1412 = vadd.f32 %v1335, %v1411
          %1413 = vdwg.mxu0
          %1414 = vst [vmem:[#allocation18] sm:$0xff] %v1395
          %1415 = vst [vmem:[#allocation18 + $0x8] sm:$0xff] %v1397
          %1416 = vst [vmem:[#allocation18 + $0x10] sm:$0xff] %v1400
          %1417 = vst [vmem:[#allocation18 + $0x18] sm:$0xff] %v1402
          %1418 = vst [vmem:[#allocation18 + $0x20] sm:$0xff] %v1405
          %1419 = vst [vmem:[#allocation18 + $0x28] sm:$0xff] %v1407
          %1420 = vst [vmem:[#allocation18 + $0x30] sm:$0xff] %v1410
          %1421 = vst [vmem:[#allocation18 + $0x38] sm:$0xff] %v1412
        $region108: #{tpu_custom_call.1} parent=67 // pred_fallthru
          _
        // Predicated region
        $region109: #{tpu_custom_call.1} parent=67 // pred_check
          %p1422 = pneg %p313
        $region110: #{tpu_custom_call.1} parent=67 // pred_check_branch
          %1424 = sbr.rel (%p1422) target = $region112
        $region111: #{tpu_custom_call.1} parent=67 // pred_region
          %1426 = vsyncadd [#allocation6], 0
          %s1427 = sshll.u32 [#allocation18], 4
          %s1428 = int_to_ptr.vmem [resolvable:$true] %s1427
          %s1429 = sshll.u32 %s12, 4
          %s1430 = int_to_ptr.hbm [resolvable:$true] %s1429
          %1435 = dma.vmem_to_hbm [thread:$0]  %s1428, 1024, %s1430, [#allocation6], 128, 128, 8
        $region112: #{tpu_custom_call.1} parent=67 // pred_fallthru
          _
        // Predicated region
        $region113: #{tpu_custom_call.1} parent=67 // pred_check
          %p1436 = pneg %p313
        $region114: #{tpu_custom_call.1} parent=67 // pred_check_branch
          %1438 = sbr.rel (%p1436) target = $region116
        $region115: #{tpu_custom_call.1} parent=67 // pred_region
          %1440 = dma.done [#allocation6], 1024
        $region116: #{tpu_custom_call.1} parent=67 // pred_fallthru
          _
      $region68: #{tpu_custom_call.1} parent=5 // pred_fallthru
        _
      %p1441 = scmp.le.s32.totalorder 2, %s28
      // Predicated region
      $region117: #{tpu_custom_call.1} parent=5 // pred_check
        %p1442 = pneg %p1441
      $region118: #{tpu_custom_call.1} parent=5 // pred_check_branch
        %1444 = sbr.rel (%p1442) target = $region120
      $region119: #{tpu_custom_call.1} parent=5 // pred_region
        %s1445 = ssub.s32 %s28, 2
      $region120: #{tpu_custom_call.1} parent=5 // pred_fallthru
        _
    $region6: #{tpu_custom_call.1} parent=1 // loop_footer
      %s32 = sadd.s32 1, %s28
    $region7: #{tpu_custom_call.1} parent=1 // loop_footer_branch
      %27 = sbr.rel target = $region3
    $region8: #{tpu_custom_call.1} parent=1 // loop_exit
      _
    %1446 = vsyncpa [#allocation5], 1
    %s1447 = scalar_lea.sflag [#allocation5], 1
    %1448 = vsyncpa %s1447, 1
    %1449 = vsyncpa [#allocation8], 1
    %s1450 = scalar_lea.sflag [#allocation8], 1
    %1451 = vsyncpa %s1450, 1
    %1452 = vsyncpa [#allocation11], 1
    %s1453 = scalar_lea.sflag [#allocation11], 1
    %1454 = vsyncpa %s1453, 1
    %1455 = vsyncpa [#allocation14], 1
    %1456 = vsyncpa [#allocation17], 1
    %1457 = vsyncpa [#allocation6], 1
    %s1458 = scalar_lea.sflag [#allocation6], 1
    %1459 = vsyncpa %s1458, 1

</llo_original>
